<compile_context>
chip_gen: v6e
topology: v6e:2x2x1
jax: 0.10.0
libtpu: 0.0.40
codegen_flags: <defaults>
</compile_context>

<pallas_src>
import functools

import jax
import jax.numpy as jnp
from jax.experimental import pallas as pl
from jax.experimental.pallas import tpu as pltpu

EPS = 1e-5


def dense_block_kernel(x_ref, w_ref, b_ref, g_ref, beta_ref, g2_ref, o_ref,
                       *, img_h, img_w, conv_dtype):
    # x_ref    : (N*H, WC)                 f32  activations (lane-dense slab)
    # w_ref    : (num_conv, 3*WC, WC)      conv_dtype  banded conv weights
    #                                      (dh blocks stacked along K, dw taps
    #                                       + W zero-padding folded in)
    # b_ref    : (num_conv, 1, WC)         f32  conv bias tiled per column
    # g_ref    : (num_conv, 1, WC)         f32  BN gamma tiled per column
    # beta_ref : (num_conv, 1, WC)         f32  BN beta  tiled per column
    # g2_ref   : (2*WC, 2*WC)              f32  blockdiag(same-channel-sum G, G)
    # o_ref    : (N*H, WC)                 output
    nh, wc = x_ref.shape
    num_conv = w_ref.shape[0]
    inv_count = 1.0 / float(nh * img_w)          # 1 / (N*H*W)

    # Row-boundary masks (layer-invariant, computed once): zero the dh=0 tap on
    # image-top rows and the dh=2 tap on image-bottom rows.  Because rows are
    # ordered (n, h), this simultaneously implements the conv zero-padding
    # along H and stops rolls from bleeding across batch-image boundaries.
    hpos = jax.lax.broadcasted_iota(jnp.int32, (nh, wc), 0) % img_h
    not_top = (hpos != 0).astype(jnp.float32)
    not_bot = (hpos != img_h - 1).astype(jnp.float32)

    cur = x_ref[...].astype(jnp.float32)         # outs[i] (current conv input)
    skip = jnp.zeros((nh, wc), jnp.float32)      # running sum(outs[0 .. i-1])

    for i in range(num_conv):
        # 3x3 "same" conv as ONE (NH, 3*WC) x (3*WC, WC) matmul per layer.
        # dh = +/-1 taps come from XLU sublane rolls (no VMEM scratch round
        # trip, no sublane-unaligned reloads); roll is cyclic so positive
        # shifts only (nh - 1 == roll by -1), boundaries masked to zero.
        tap_up = pltpu.roll(cur, shift=1, axis=0) * not_top        # cur[r-1]
        tap_dn = pltpu.roll(cur, shift=nh - 1, axis=0) * not_bot   # cur[r+1]
        taps = jnp.concatenate([tap_up, cur, tap_dn],
                               axis=1).astype(conv_dtype)          # (NH, 3*WC)
        acc = skip + b_ref[i] + jnp.dot(
            taps, w_ref[i], preferred_element_type=jnp.float32)    # (NH, WC)

        # BatchNorm2d (training mode): single-pass batch stats, all lane-dense.
        # Sublane reduce -> (1, WC) column sums, one (1, 2*WC) x (2*WC, 2*WC)
        # matmul sums columns of the same channel and broadcasts back to
        # column width in a single MXU push.
        colsum = jnp.sum(acc, axis=0, keepdims=True)               # (1, WC)
        colsumsq = jnp.sum(acc * acc, axis=0, keepdims=True)       # (1, WC)
        stats = jnp.concatenate([colsum, colsumsq], axis=1)        # (1, 2*WC)
        stats = jnp.dot(stats, g2_ref[...],
                        preferred_element_type=jnp.float32) * inv_count
        mean = stats[:, :wc]                                       # (1, WC)
        var = jnp.maximum(stats[:, wc:] - mean * mean, 0.0)        # biased var
        inv_std = jax.lax.rsqrt(var + EPS)                         # EUP rsqrt
        scale = g_ref[i] * inv_std                                 # (1, WC)
        shift = beta_ref[i] - mean * scale                         # (1, WC)

        # Advance the running skip sum with the *current* conv input (outs[i])
        # BEFORE cur becomes outs[i+1]  (skips at layer i exclude outs[i]).
        skip = skip + cur
        cur = jnp.maximum(acc * scale + shift, 0.0)                # ReLU(BN)

    o_ref[...] = cur.astype(o_ref.dtype)         # lane-dense 128-wide store


def _banded_conv_weights(weights, w):
    """(num_conv,3,3,Cin,Cout) HWIO -> (num_conv, 3*W*Cin, W*Cout).

    For each kernel row dh, the three dw taps become bands of a block matrix
    acting on the folded (W*C) lane axis; bands falling outside [0, W) are
    simply absent, which implements the zero padding along W.  The three dh
    blocks are stacked along K so the whole conv is one matmul per layer.
    """
    num_conv, kh, kw, cin, cout = weights.shape
    shift = jnp.stack(
        [jnp.eye(w, k=1 - dw, dtype=jnp.float32) for dw in range(kw)])  # (3,W,W)
    banded = jnp.einsum('dab,nhdio->nhaibo', shift, weights.astype(jnp.float32))
    return banded.reshape(num_conv, kh * w * cin, w * cout)


def single_level_densenet_img(x, weights, biases, gammas, betas,
                              conv_dtype=jnp.float32):
    """x: (N,H,W,C); weights: (num_conv,3,3,C,C); biases/gammas/betas: (num_conv,1,C).

    conv_dtype: dtype of the conv matmul operands (weights + taps).  Keep
    jnp.float32 for exact parity with the f32 reference; jnp.bfloat16 gives
    ~3x MXU throughput for production (BN math stays f32 either way).
    """
    n, h, w, c = x.shape
    num_conv = weights.shape[0]
    wc = w * c

    x2d = x.reshape(n * h, wc)                                     # lane-dense slab
    wbig = _banded_conv_weights(weights, w).astype(conv_dtype)     # (nc,3*WC,WC)
    bias_col = jnp.tile(biases.astype(jnp.float32), (1, 1, w))     # (nc,1,WC)
    gamma_col = jnp.tile(gammas.astype(jnp.float32), (1, 1, w))    # (nc,1,WC)
    beta_col = jnp.tile(betas.astype(jnp.float32), (1, 1, w))      # (nc,1,WC)

    # Same-channel sum+broadcast matrix G[a,b] = (a % C == b % C), then
    # block-diagonal duplicate so (colsum | colsumsq) is handled by one matmul.
    gsum = jnp.tile(jnp.eye(c, dtype=jnp.float32), (w, 1))         # (WC, C)
    gmat = gsum @ gsum.T                                           # (WC, WC)
    g2 = jnp.kron(jnp.eye(2, dtype=jnp.float32), gmat)             # (2WC, 2WC)

    vmem = pl.BlockSpec(memory_space=pltpu.MemorySpace.VMEM)

    operand_bytes = int(
        2 * x2d.size * x2d.dtype.itemsize
        + wbig.size * wbig.dtype.itemsize
        + 4 * (bias_col.size + gamma_col.size + beta_col.size + g2.size))
    try:
        phys_vmem = int(pltpu.get_tpu_info().vmem_capacity_bytes)
    except Exception:
        phys_vmem = 64 * 2 ** 20          # conservative (v7x per-core VMEM)
    vmem_limit = int(min(int(0.45 * phys_vmem),
                         max(16 * 2 ** 20, 4 * operand_bytes)))

    kernel = functools.partial(dense_block_kernel, img_h=h, img_w=w,
                               conv_dtype=conv_dtype)

    # TODO(synk): production-sized inputs need a ("parallel",) grid over row
    # tiles with a two-phase BN reduction (pipelined HBM<->VMEM, second v7x
    # TensorCore); at this toy size a grid only adds per-step overhead.
    out2d = pl.pallas_call(
        kernel,
        out_shape=jax.ShapeDtypeStruct((n * h, wc), x.dtype),
        in_specs=[vmem] * 6,
        out_specs=vmem,
        compiler_params=pltpu.CompilerParams(vmem_limit_bytes=vmem_limit),
    )(x2d, wbig, bias_col, gamma_col, beta_col, g2)
    return out2d.reshape(n, h, w, c)


def reference(x, weights, biases, gammas, betas):
    """Pure-JAX reference (same math, XLA conv)."""
    num_conv = weights.shape[0]
    outs = [x.astype(jnp.float32)]
    for i in range(num_conv):
        t = jax.lax.conv_general_dilated(
            outs[i], weights[i], window_strides=(1, 1), padding="SAME",
            dimension_numbers=("NHWC", "HWIO", "NHWC"),
            precision=jax.lax.Precision.HIGHEST,
        )
        t = t + biases[i].reshape(1, 1, 1, -1)
        for j in range(i):
            t = t + outs[j]
        mean = jnp.mean(t, axis=(0, 1, 2), keepdims=True)
        var = jnp.mean((t - mean) ** 2, axis=(0, 1, 2), keepdims=True)
        y = (t - mean) / jnp.sqrt(var + EPS)
        y = y * gammas[i].reshape(1, 1, 1, -1) + betas[i].reshape(1, 1, 1, -1)
        outs.append(jnp.maximum(y, 0.0))
    return outs[-1]


if __name__ == "__main__":
    # Small shapes: batch=2, filters(channels)=8, spatial=16x16, num_conv=4.
    # (W*C = 128 -> the folded lane axis is exactly one lane tile.)
    N, H, W, C = 2, 16, 16, 8
    num_conv = 4

    key = jax.random.PRNGKey(0)
    kx, kw, kb, kg, kbeta = jax.random.split(key, 5)

    x = jax.random.normal(kx, (N, H, W, C), dtype=jnp.float32)
    # Deterministic synthetic parameters (shapes match nn.Conv2d(C, C, 3) + BN(C)).
    weights = 0.1 * jax.random.normal(kw, (num_conv, 3, 3, C, C), dtype=jnp.float32)
    biases = 0.1 * jax.random.normal(kb, (num_conv, 1, C), dtype=jnp.float32)
    gammas = 1.0 + 0.1 * jax.random.normal(kg, (num_conv, 1, C), dtype=jnp.float32)
    betas = 0.1 * jax.random.normal(kbeta, (num_conv, 1, C), dtype=jnp.float32)

    out = jax.block_until_ready(
        single_level_densenet_img(x, weights, biases, gammas, betas))
    ref = jax.block_until_ready(reference(x, weights, biases, gammas, betas))

    assert out.shape == (N, H, W, C)
    max_err = float(jnp.max(jnp.abs(out - ref)))
    assert jnp.allclose(out, ref, rtol=1e-3, atol=1e-3), max_err

    print("KERNEL_OK")
</pallas_src>

<mosaic_0001>
module attributes {stable_mosaic.version = 11 : i64} {
  func.func @dense_block_kernel(%arg0: memref<32x128xf32, #tpu.memory_space<vmem>>, %arg1: memref<4x384x128xf32, #tpu.memory_space<vmem>>, %arg2: memref<4x1x128xf32, #tpu.memory_space<vmem>>, %arg3: memref<4x1x128xf32, #tpu.memory_space<vmem>>, %arg4: memref<4x1x128xf32, #tpu.memory_space<vmem>>, %arg5: memref<256x256xf32, #tpu.memory_space<vmem>>, %arg6: memref<32x128xf32, #tpu.memory_space<vmem>>) attributes {dimension_semantics = [], scalar_prefetch = 0 : i64, scratch_operands = 0 : i64, tpu.core_type = #tpu.core_type<tc>} {
    %0 = tpu.iota {dimensions = array<i32: 0>} : vector<32x128xi32>
    %c16_i32 = arith.constant 16 : i32
    %c0_i32 = arith.constant 0 : i32
    %1 = arith.cmpi eq, %c16_i32, %c0_i32 : i32
    %c1_i32 = arith.constant 1 : i32
    %2 = arith.select %1, %c1_i32, %c16_i32 : i32
    %3 = vector.broadcast %2 : i32 to vector<32x128xi32>
    %4 = arith.remsi %0, %3 : vector<32x128xi32>
    %c0_i32_0 = arith.constant 0 : i32
    %5 = vector.broadcast %c0_i32_0 : i32 to vector<32x128xi32>
    %6 = arith.cmpi ne, %4, %5 : vector<32x128xi32>
    %c0_i32_1 = arith.constant 0 : i32
    %7 = vector.broadcast %c0_i32_1 : i32 to vector<32x128xi32>
    %8 = arith.cmpi slt, %4, %7 : vector<32x128xi32>
    %c0_i32_2 = arith.constant 0 : i32
    %9 = arith.cmpi slt, %2, %c0_i32_2 : i32
    %10 = vector.broadcast %9 : i1 to vector<32x128xi1>
    %11 = vector.broadcast %10 : vector<32x128xi1> to vector<32x128xi1>
    %12 = arith.xori %8, %11 : vector<32x128xi1>
    %13 = arith.andi %12, %6 : vector<32x128xi1>
    %14 = vector.broadcast %2 : i32 to vector<32x128xi32>
    %15 = arith.addi %4, %14 : vector<32x128xi32>
    %16 = arith.select %13, %15, %4 : vector<32x128xi1>, vector<32x128xi32>
    %c0_i32_3 = arith.constant 0 : i32
    %17 = vector.broadcast %c0_i32_3 : i32 to vector<32x128xi32>
    %18 = arith.cmpi ne, %16, %17 : vector<32x128xi32>
    %19 = arith.extui %18 : vector<32x128xi1> to vector<32x128xi32>
    %20 = arith.sitofp %19 : vector<32x128xi32> to vector<32x128xf32>
    %c15_i32 = arith.constant 15 : i32
    %21 = vector.broadcast %c15_i32 : i32 to vector<32x128xi32>
    %22 = arith.cmpi ne, %16, %21 : vector<32x128xi32>
    %23 = arith.extui %22 : vector<32x128xi1> to vector<32x128xi32>
    %24 = arith.sitofp %23 : vector<32x128xi32> to vector<32x128xf32>
    %c0 = arith.constant 0 : index
    %c0_4 = arith.constant 0 : index
    %25 = vector.load %arg0[%c0, %c0_4] : memref<32x128xf32, #tpu.memory_space<vmem>>, vector<32x128xf32>
    %cst = arith.constant 0.000000e+00 : f32
    %26 = vector.broadcast %cst : f32 to vector<32x128xf32>
    %c1_i32_5 = arith.constant 1 : i32
    %27 = tpu.dynamic_rotate %25 by %c1_i32_5 dim 0 : vector<32x128xf32>, i32 -> vector<32x128xf32>
    %28 = arith.mulf %27, %20 : vector<32x128xf32>
    %c31_i32 = arith.constant 31 : i32
    %29 = tpu.dynamic_rotate %25 by %c31_i32 dim 0 : vector<32x128xf32>, i32 -> vector<32x128xf32>
    %30 = arith.mulf %29, %24 : vector<32x128xf32>
    %31 = tpu.concatenate %28, %25, %30 in 1 : vector<32x128xf32>, vector<32x128xf32>, vector<32x128xf32> -> vector<32x384xf32>
    %c0_6 = arith.constant 0 : index
    %c0_7 = arith.constant 0 : index
    %c0_8 = arith.constant 0 : index
    %32 = vector.load %arg2[%c0_6, %c0_7, %c0_8] : memref<4x1x128xf32, #tpu.memory_space<vmem>>, vector<1x1x128xf32>
    %33 = vector.shape_cast %32 : vector<1x1x128xf32> to vector<1x128xf32>
    %34 = vector.broadcast %33 : vector<1x128xf32> to vector<32x128xf32>
    %35 = arith.addf %26, %34 : vector<32x128xf32>
    %c0_9 = arith.constant 0 : index
    %c0_10 = arith.constant 0 : index
    %c0_11 = arith.constant 0 : index
    %36 = vector.load %arg1[%c0_9, %c0_10, %c0_11] : memref<4x384x128xf32, #tpu.memory_space<vmem>>, vector<1x384x128xf32>
    %37 = vector.shape_cast %36 : vector<1x384x128xf32> to vector<384x128xf32>
    %cst_12 = arith.constant dense<0.000000e+00> : vector<32x128xf32>
    %38 = tpu.matmul %31, %37, %cst_12 {dimension_numbers = #tpu.dot_dimension_numbers<[1], [0], [0], [1], [0, 0, 1, 1], [], []>} : vector<32x384xf32>, vector<384x128xf32>, vector<32x128xf32> -> vector<32x128xf32>
    %39 = arith.addf %35, %38 : vector<32x128xf32>
    %cst_13 = arith.constant dense<0.000000e+00> : vector<128xf32>
    %40 = vector.multi_reduction <add>, %39, %cst_13 [0] : vector<32x128xf32> to vector<128xf32>
    %41 = vector.shape_cast %40 : vector<128xf32> to vector<1x128xf32>
    %42 = arith.mulf %39, %39 : vector<32x128xf32>
    %cst_14 = arith.constant dense<0.000000e+00> : vector<128xf32>
    %43 = vector.multi_reduction <add>, %42, %cst_14 [0] : vector<32x128xf32> to vector<128xf32>
    %44 = vector.shape_cast %43 : vector<128xf32> to vector<1x128xf32>
    %45 = tpu.concatenate %41, %44 in 1 : vector<1x128xf32>, vector<1x128xf32> -> vector<1x256xf32>
    %c0_15 = arith.constant 0 : index
    %c0_16 = arith.constant 0 : index
    %46 = vector.load %arg5[%c0_15, %c0_16] : memref<256x256xf32, #tpu.memory_space<vmem>>, vector<256x256xf32>
    %cst_17 = arith.constant dense<0.000000e+00> : vector<1x256xf32>
    %47 = tpu.matmul %45, %46, %cst_17 {dimension_numbers = #tpu.dot_dimension_numbers<[1], [0], [0], [1], [0, 0, 1, 1], [], []>} : vector<1x256xf32>, vector<256x256xf32>, vector<1x256xf32> -> vector<1x256xf32>
    %cst_18 = arith.constant 0.001953125 : f32
    %48 = vector.broadcast %cst_18 : f32 to vector<1x256xf32>
    %49 = arith.mulf %47, %48 : vector<1x256xf32>
    %50 = vector.extract_strided_slice %49 {offsets = [0, 0], sizes = [1, 128], strides = [1, 1]} : vector<1x256xf32> to vector<1x128xf32>
    %51 = vector.extract_strided_slice %49 {offsets = [0, 128], sizes = [1, 128], strides = [1, 1]} : vector<1x256xf32> to vector<1x128xf32>
    %52 = arith.mulf %50, %50 : vector<1x128xf32>
    %53 = arith.subf %51, %52 : vector<1x128xf32>
    %cst_19 = arith.constant 0.000000e+00 : f32
    %54 = vector.broadcast %cst_19 : f32 to vector<1x128xf32>
    %55 = arith.maximumf %53, %54 : vector<1x128xf32>
    %cst_20 = arith.constant 9.99999974E-6 : f32
    %56 = vector.broadcast %cst_20 : f32 to vector<1x128xf32>
    %57 = arith.addf %55, %56 : vector<1x128xf32>
    %58 = math.rsqrt %57 : vector<1x128xf32>
    %c0_21 = arith.constant 0 : index
    %c0_22 = arith.constant 0 : index
    %c0_23 = arith.constant 0 : index
    %59 = vector.load %arg3[%c0_21, %c0_22, %c0_23] : memref<4x1x128xf32, #tpu.memory_space<vmem>>, vector<1x1x128xf32>
    %60 = vector.shape_cast %59 : vector<1x1x128xf32> to vector<1x128xf32>
    %61 = arith.mulf %60, %58 : vector<1x128xf32>
    %c0_24 = arith.constant 0 : index
    %c0_25 = arith.constant 0 : index
    %c0_26 = arith.constant 0 : index
    %62 = vector.load %arg4[%c0_24, %c0_25, %c0_26] : memref<4x1x128xf32, #tpu.memory_space<vmem>>, vector<1x1x128xf32>
    %63 = vector.shape_cast %62 : vector<1x1x128xf32> to vector<1x128xf32>
    %64 = arith.mulf %50, %61 : vector<1x128xf32>
    %65 = arith.subf %63, %64 : vector<1x128xf32>
    %66 = arith.addf %26, %25 : vector<32x128xf32>
    %67 = vector.broadcast %61 : vector<1x128xf32> to vector<32x128xf32>
    %68 = arith.mulf %39, %67 : vector<32x128xf32>
    %69 = vector.broadcast %65 : vector<1x128xf32> to vector<32x128xf32>
    %70 = arith.addf %68, %69 : vector<32x128xf32>
    %cst_27 = arith.constant 0.000000e+00 : f32
    %71 = vector.broadcast %cst_27 : f32 to vector<32x128xf32>
    %72 = arith.maximumf %70, %71 : vector<32x128xf32>
    %c1_i32_28 = arith.constant 1 : i32
    %73 = tpu.dynamic_rotate %72 by %c1_i32_28 dim 0 : vector<32x128xf32>, i32 -> vector<32x128xf32>
    %74 = arith.mulf %73, %20 : vector<32x128xf32>
    %c31_i32_29 = arith.constant 31 : i32
    %75 = tpu.dynamic_rotate %72 by %c31_i32_29 dim 0 : vector<32x128xf32>, i32 -> vector<32x128xf32>
    %76 = arith.mulf %75, %24 : vector<32x128xf32>
    %77 = tpu.concatenate %74, %72, %76 in 1 : vector<32x128xf32>, vector<32x128xf32>, vector<32x128xf32> -> vector<32x384xf32>
    %c1 = arith.constant 1 : index
    %c0_30 = arith.constant 0 : index
    %c0_31 = arith.constant 0 : index
    %78 = vector.load %arg2[%c1, %c0_30, %c0_31] : memref<4x1x128xf32, #tpu.memory_space<vmem>>, vector<1x1x128xf32>
    %79 = vector.shape_cast %78 : vector<1x1x128xf32> to vector<1x128xf32>
    %80 = vector.broadcast %79 : vector<1x128xf32> to vector<32x128xf32>
    %81 = arith.addf %66, %80 : vector<32x128xf32>
    %c1_32 = arith.constant 1 : index
    %c0_33 = arith.constant 0 : index
    %c0_34 = arith.constant 0 : index
    %82 = vector.load %arg1[%c1_32, %c0_33, %c0_34] : memref<4x384x128xf32, #tpu.memory_space<vmem>>, vector<1x384x128xf32>
    %83 = vector.shape_cast %82 : vector<1x384x128xf32> to vector<384x128xf32>
    %cst_35 = arith.constant dense<0.000000e+00> : vector<32x128xf32>
    %84 = tpu.matmul %77, %83, %cst_35 {dimension_numbers = #tpu.dot_dimension_numbers<[1], [0], [0], [1], [0, 0, 1, 1], [], []>} : vector<32x384xf32>, vector<384x128xf32>, vector<32x128xf32> -> vector<32x128xf32>
    %85 = arith.addf %81, %84 : vector<32x128xf32>
    %cst_36 = arith.constant dense<0.000000e+00> : vector<128xf32>
    %86 = vector.multi_reduction <add>, %85, %cst_36 [0] : vector<32x128xf32> to vector<128xf32>
    %87 = vector.shape_cast %86 : vector<128xf32> to vector<1x128xf32>
    %88 = arith.mulf %85, %85 : vector<32x128xf32>
    %cst_37 = arith.constant dense<0.000000e+00> : vector<128xf32>
    %89 = vector.multi_reduction <add>, %88, %cst_37 [0] : vector<32x128xf32> to vector<128xf32>
    %90 = vector.shape_cast %89 : vector<128xf32> to vector<1x128xf32>
    %91 = tpu.concatenate %87, %90 in 1 : vector<1x128xf32>, vector<1x128xf32> -> vector<1x256xf32>
    %c0_38 = arith.constant 0 : index
    %c0_39 = arith.constant 0 : index
    %92 = vector.load %arg5[%c0_38, %c0_39] : memref<256x256xf32, #tpu.memory_space<vmem>>, vector<256x256xf32>
    %cst_40 = arith.constant dense<0.000000e+00> : vector<1x256xf32>
    %93 = tpu.matmul %91, %92, %cst_40 {dimension_numbers = #tpu.dot_dimension_numbers<[1], [0], [0], [1], [0, 0, 1, 1], [], []>} : vector<1x256xf32>, vector<256x256xf32>, vector<1x256xf32> -> vector<1x256xf32>
    %cst_41 = arith.constant 0.001953125 : f32
    %94 = vector.broadcast %cst_41 : f32 to vector<1x256xf32>
    %95 = arith.mulf %93, %94 : vector<1x256xf32>
    %96 = vector.extract_strided_slice %95 {offsets = [0, 0], sizes = [1, 128], strides = [1, 1]} : vector<1x256xf32> to vector<1x128xf32>
    %97 = vector.extract_strided_slice %95 {offsets = [0, 128], sizes = [1, 128], strides = [1, 1]} : vector<1x256xf32> to vector<1x128xf32>
    %98 = arith.mulf %96, %96 : vector<1x128xf32>
    %99 = arith.subf %97, %98 : vector<1x128xf32>
    %cst_42 = arith.constant 0.000000e+00 : f32
    %100 = vector.broadcast %cst_42 : f32 to vector<1x128xf32>
    %101 = arith.maximumf %99, %100 : vector<1x128xf32>
    %cst_43 = arith.constant 9.99999974E-6 : f32
    %102 = vector.broadcast %cst_43 : f32 to vector<1x128xf32>
    %103 = arith.addf %101, %102 : vector<1x128xf32>
    %104 = math.rsqrt %103 : vector<1x128xf32>
    %c1_44 = arith.constant 1 : index
    %c0_45 = arith.constant 0 : index
    %c0_46 = arith.constant 0 : index
    %105 = vector.load %arg3[%c1_44, %c0_45, %c0_46] : memref<4x1x128xf32, #tpu.memory_space<vmem>>, vector<1x1x128xf32>
    %106 = vector.shape_cast %105 : vector<1x1x128xf32> to vector<1x128xf32>
    %107 = arith.mulf %106, %104 : vector<1x128xf32>
    %c1_47 = arith.constant 1 : index
    %c0_48 = arith.constant 0 : index
    %c0_49 = arith.constant 0 : index
    %108 = vector.load %arg4[%c1_47, %c0_48, %c0_49] : memref<4x1x128xf32, #tpu.memory_space<vmem>>, vector<1x1x128xf32>
    %109 = vector.shape_cast %108 : vector<1x1x128xf32> to vector<1x128xf32>
    %110 = arith.mulf %96, %107 : vector<1x128xf32>
    %111 = arith.subf %109, %110 : vector<1x128xf32>
    %112 = arith.addf %66, %72 : vector<32x128xf32>
    %113 = vector.broadcast %107 : vector<1x128xf32> to vector<32x128xf32>
    %114 = arith.mulf %85, %113 : vector<32x128xf32>
    %115 = vector.broadcast %111 : vector<1x128xf32> to vector<32x128xf32>
    %116 = arith.addf %114, %115 : vector<32x128xf32>
    %cst_50 = arith.constant 0.000000e+00 : f32
    %117 = vector.broadcast %cst_50 : f32 to vector<32x128xf32>
    %118 = arith.maximumf %116, %117 : vector<32x128xf32>
    %c1_i32_51 = arith.constant 1 : i32
    %119 = tpu.dynamic_rotate %118 by %c1_i32_51 dim 0 : vector<32x128xf32>, i32 -> vector<32x128xf32>
    %120 = arith.mulf %119, %20 : vector<32x128xf32>
    %c31_i32_52 = arith.constant 31 : i32
    %121 = tpu.dynamic_rotate %118 by %c31_i32_52 dim 0 : vector<32x128xf32>, i32 -> vector<32x128xf32>
    %122 = arith.mulf %121, %24 : vector<32x128xf32>
    %123 = tpu.concatenate %120, %118, %122 in 1 : vector<32x128xf32>, vector<32x128xf32>, vector<32x128xf32> -> vector<32x384xf32>
    %c2 = arith.constant 2 : index
    %c0_53 = arith.constant 0 : index
    %c0_54 = arith.constant 0 : index
    %124 = vector.load %arg2[%c2, %c0_53, %c0_54] : memref<4x1x128xf32, #tpu.memory_space<vmem>>, vector<1x1x128xf32>
    %125 = vector.shape_cast %124 : vector<1x1x128xf32> to vector<1x128xf32>
    %126 = vector.broadcast %125 : vector<1x128xf32> to vector<32x128xf32>
    %127 = arith.addf %112, %126 : vector<32x128xf32>
    %c2_55 = arith.constant 2 : index
    %c0_56 = arith.constant 0 : index
    %c0_57 = arith.constant 0 : index
    %128 = vector.load %arg1[%c2_55, %c0_56, %c0_57] : memref<4x384x128xf32, #tpu.memory_space<vmem>>, vector<1x384x128xf32>
    %129 = vector.shape_cast %128 : vector<1x384x128xf32> to vector<384x128xf32>
    %cst_58 = arith.constant dense<0.000000e+00> : vector<32x128xf32>
    %130 = tpu.matmul %123, %129, %cst_58 {dimension_numbers = #tpu.dot_dimension_numbers<[1], [0], [0], [1], [0, 0, 1, 1], [], []>} : vector<32x384xf32>, vector<384x128xf32>, vector<32x128xf32> -> vector<32x128xf32>
    %131 = arith.addf %127, %130 : vector<32x128xf32>
    %cst_59 = arith.constant dense<0.000000e+00> : vector<128xf32>
    %132 = vector.multi_reduction <add>, %131, %cst_59 [0] : vector<32x128xf32> to vector<128xf32>
    %133 = vector.shape_cast %132 : vector<128xf32> to vector<1x128xf32>
    %134 = arith.mulf %131, %131 : vector<32x128xf32>
    %cst_60 = arith.constant dense<0.000000e+00> : vector<128xf32>
    %135 = vector.multi_reduction <add>, %134, %cst_60 [0] : vector<32x128xf32> to vector<128xf32>
    %136 = vector.shape_cast %135 : vector<128xf32> to vector<1x128xf32>
    %137 = tpu.concatenate %133, %136 in 1 : vector<1x128xf32>, vector<1x128xf32> -> vector<1x256xf32>
    %c0_61 = arith.constant 0 : index
    %c0_62 = arith.constant 0 : index
    %138 = vector.load %arg5[%c0_61, %c0_62] : memref<256x256xf32, #tpu.memory_space<vmem>>, vector<256x256xf32>
    %cst_63 = arith.constant dense<0.000000e+00> : vector<1x256xf32>
    %139 = tpu.matmul %137, %138, %cst_63 {dimension_numbers = #tpu.dot_dimension_numbers<[1], [0], [0], [1], [0, 0, 1, 1], [], []>} : vector<1x256xf32>, vector<256x256xf32>, vector<1x256xf32> -> vector<1x256xf32>
    %cst_64 = arith.constant 0.001953125 : f32
    %140 = vector.broadcast %cst_64 : f32 to vector<1x256xf32>
    %141 = arith.mulf %139, %140 : vector<1x256xf32>
    %142 = vector.extract_strided_slice %141 {offsets = [0, 0], sizes = [1, 128], strides = [1, 1]} : vector<1x256xf32> to vector<1x128xf32>
    %143 = vector.extract_strided_slice %141 {offsets = [0, 128], sizes = [1, 128], strides = [1, 1]} : vector<1x256xf32> to vector<1x128xf32>
    %144 = arith.mulf %142, %142 : vector<1x128xf32>
    %145 = arith.subf %143, %144 : vector<1x128xf32>
    %cst_65 = arith.constant 0.000000e+00 : f32
    %146 = vector.broadcast %cst_65 : f32 to vector<1x128xf32>
    %147 = arith.maximumf %145, %146 : vector<1x128xf32>
    %cst_66 = arith.constant 9.99999974E-6 : f32
    %148 = vector.broadcast %cst_66 : f32 to vector<1x128xf32>
    %149 = arith.addf %147, %148 : vector<1x128xf32>
    %150 = math.rsqrt %149 : vector<1x128xf32>
    %c2_67 = arith.constant 2 : index
    %c0_68 = arith.constant 0 : index
    %c0_69 = arith.constant 0 : index
    %151 = vector.load %arg3[%c2_67, %c0_68, %c0_69] : memref<4x1x128xf32, #tpu.memory_space<vmem>>, vector<1x1x128xf32>
    %152 = vector.shape_cast %151 : vector<1x1x128xf32> to vector<1x128xf32>
    %153 = arith.mulf %152, %150 : vector<1x128xf32>
    %c2_70 = arith.constant 2 : index
    %c0_71 = arith.constant 0 : index
    %c0_72 = arith.constant 0 : index
    %154 = vector.load %arg4[%c2_70, %c0_71, %c0_72] : memref<4x1x128xf32, #tpu.memory_space<vmem>>, vector<1x1x128xf32>
    %155 = vector.shape_cast %154 : vector<1x1x128xf32> to vector<1x128xf32>
    %156 = arith.mulf %142, %153 : vector<1x128xf32>
    %157 = arith.subf %155, %156 : vector<1x128xf32>
    %158 = arith.addf %112, %118 : vector<32x128xf32>
    %159 = vector.broadcast %153 : vector<1x128xf32> to vector<32x128xf32>
    %160 = arith.mulf %131, %159 : vector<32x128xf32>
    %161 = vector.broadcast %157 : vector<1x128xf32> to vector<32x128xf32>
    %162 = arith.addf %160, %161 : vector<32x128xf32>
    %cst_73 = arith.constant 0.000000e+00 : f32
    %163 = vector.broadcast %cst_73 : f32 to vector<32x128xf32>
    %164 = arith.maximumf %162, %163 : vector<32x128xf32>
    %c1_i32_74 = arith.constant 1 : i32
    %165 = tpu.dynamic_rotate %164 by %c1_i32_74 dim 0 : vector<32x128xf32>, i32 -> vector<32x128xf32>
    %166 = arith.mulf %165, %20 : vector<32x128xf32>
    %c31_i32_75 = arith.constant 31 : i32
    %167 = tpu.dynamic_rotate %164 by %c31_i32_75 dim 0 : vector<32x128xf32>, i32 -> vector<32x128xf32>
    %168 = arith.mulf %167, %24 : vector<32x128xf32>
    %169 = tpu.concatenate %166, %164, %168 in 1 : vector<32x128xf32>, vector<32x128xf32>, vector<32x128xf32> -> vector<32x384xf32>
    %c3 = arith.constant 3 : index
    %c0_76 = arith.constant 0 : index
    %c0_77 = arith.constant 0 : index
    %170 = vector.load %arg2[%c3, %c0_76, %c0_77] : memref<4x1x128xf32, #tpu.memory_space<vmem>>, vector<1x1x128xf32>
    %171 = vector.shape_cast %170 : vector<1x1x128xf32> to vector<1x128xf32>
    %172 = vector.broadcast %171 : vector<1x128xf32> to vector<32x128xf32>
    %173 = arith.addf %158, %172 : vector<32x128xf32>
    %c3_78 = arith.constant 3 : index
    %c0_79 = arith.constant 0 : index
    %c0_80 = arith.constant 0 : index
    %174 = vector.load %arg1[%c3_78, %c0_79, %c0_80] : memref<4x384x128xf32, #tpu.memory_space<vmem>>, vector<1x384x128xf32>
    %175 = vector.shape_cast %174 : vector<1x384x128xf32> to vector<384x128xf32>
    %cst_81 = arith.constant dense<0.000000e+00> : vector<32x128xf32>
    %176 = tpu.matmul %169, %175, %cst_81 {dimension_numbers = #tpu.dot_dimension_numbers<[1], [0], [0], [1], [0, 0, 1, 1], [], []>} : vector<32x384xf32>, vector<384x128xf32>, vector<32x128xf32> -> vector<32x128xf32>
    %177 = arith.addf %173, %176 : vector<32x128xf32>
    %cst_82 = arith.constant dense<0.000000e+00> : vector<128xf32>
    %178 = vector.multi_reduction <add>, %177, %cst_82 [0] : vector<32x128xf32> to vector<128xf32>
    %179 = vector.shape_cast %178 : vector<128xf32> to vector<1x128xf32>
    %180 = arith.mulf %177, %177 : vector<32x128xf32>
    %cst_83 = arith.constant dense<0.000000e+00> : vector<128xf32>
    %181 = vector.multi_reduction <add>, %180, %cst_83 [0] : vector<32x128xf32> to vector<128xf32>
    %182 = vector.shape_cast %181 : vector<128xf32> to vector<1x128xf32>
    %183 = tpu.concatenate %179, %182 in 1 : vector<1x128xf32>, vector<1x128xf32> -> vector<1x256xf32>
    %c0_84 = arith.constant 0 : index
    %c0_85 = arith.constant 0 : index
    %184 = vector.load %arg5[%c0_84, %c0_85] : memref<256x256xf32, #tpu.memory_space<vmem>>, vector<256x256xf32>
    %cst_86 = arith.constant dense<0.000000e+00> : vector<1x256xf32>
    %185 = tpu.matmul %183, %184, %cst_86 {dimension_numbers = #tpu.dot_dimension_numbers<[1], [0], [0], [1], [0, 0, 1, 1], [], []>} : vector<1x256xf32>, vector<256x256xf32>, vector<1x256xf32> -> vector<1x256xf32>
    %cst_87 = arith.constant 0.001953125 : f32
    %186 = vector.broadcast %cst_87 : f32 to vector<1x256xf32>
    %187 = arith.mulf %185, %186 : vector<1x256xf32>
    %188 = vector.extract_strided_slice %187 {offsets = [0, 0], sizes = [1, 128], strides = [1, 1]} : vector<1x256xf32> to vector<1x128xf32>
    %189 = vector.extract_strided_slice %187 {offsets = [0, 128], sizes = [1, 128], strides = [1, 1]} : vector<1x256xf32> to vector<1x128xf32>
    %190 = arith.mulf %188, %188 : vector<1x128xf32>
    %191 = arith.subf %189, %190 : vector<1x128xf32>
    %cst_88 = arith.constant 0.000000e+00 : f32
    %192 = vector.broadcast %cst_88 : f32 to vector<1x128xf32>
    %193 = arith.maximumf %191, %192 : vector<1x128xf32>
    %cst_89 = arith.constant 9.99999974E-6 : f32
    %194 = vector.broadcast %cst_89 : f32 to vector<1x128xf32>
    %195 = arith.addf %193, %194 : vector<1x128xf32>
    %196 = math.rsqrt %195 : vector<1x128xf32>
    %c3_90 = arith.constant 3 : index
    %c0_91 = arith.constant 0 : index
    %c0_92 = arith.constant 0 : index
    %197 = vector.load %arg3[%c3_90, %c0_91, %c0_92] : memref<4x1x128xf32, #tpu.memory_space<vmem>>, vector<1x1x128xf32>
    %198 = vector.shape_cast %197 : vector<1x1x128xf32> to vector<1x128xf32>
    %199 = arith.mulf %198, %196 : vector<1x128xf32>
    %c3_93 = arith.constant 3 : index
    %c0_94 = arith.constant 0 : index
    %c0_95 = arith.constant 0 : index
    %200 = vector.load %arg4[%c3_93, %c0_94, %c0_95] : memref<4x1x128xf32, #tpu.memory_space<vmem>>, vector<1x1x128xf32>
    %201 = vector.shape_cast %200 : vector<1x1x128xf32> to vector<1x128xf32>
    %202 = arith.mulf %188, %199 : vector<1x128xf32>
    %203 = arith.subf %201, %202 : vector<1x128xf32>
    %204 = vector.broadcast %199 : vector<1x128xf32> to vector<32x128xf32>
    %205 = arith.mulf %177, %204 : vector<32x128xf32>
    %206 = vector.broadcast %203 : vector<1x128xf32> to vector<32x128xf32>
    %207 = arith.addf %205, %206 : vector<32x128xf32>
    %cst_96 = arith.constant 0.000000e+00 : f32
    %208 = vector.broadcast %cst_96 : f32 to vector<32x128xf32>
    %209 = arith.maximumf %207, %208 : vector<32x128xf32>
    %c0_97 = arith.constant 0 : index
    %c0_98 = arith.constant 0 : index
    %210 = vector.load %arg6[%c0_97, %c0_98] : memref<32x128xf32, #tpu.memory_space<vmem>>, vector<32x128xf32>
    tpu.vector_store %arg6[%c0_97, %c0_98], %209 {strides = array<i32>} : memref<32x128xf32, #tpu.memory_space<vmem>>, vector<32x128xf32>,
    return
  }
}

</mosaic_0001>

<llo_original>
// kernel: tpu_custom_call.1
$region0: #{tpu_custom_call.1}
  #allocation0 [shape = 'u32[]', space=smem, size = 0x4, offset = 0x4, fixed_abs, tag = 'smem constant byte address 0x4 - core index']
  #allocation1 [shape = 'u32[144,128]{1,0:T(1,128)}', space=vmem, size = 0x12000, scoped, tag = 'internal scratch']
  %s0 = inlined_call_operand.hbm [shape: f32[32,128], index: 0, kind: input, shape index: {}]
  %s1 = inlined_call_operand.hbm [shape: f32[4,384,128], index: 1, kind: input, shape index: {}]
  %s2 = inlined_call_operand.hbm [shape: f32[4,1,128], index: 2, kind: input, shape index: {}]
  %s3 = inlined_call_operand.vmem [shape: f32[4,1,128], index: 3, kind: input, shape index: {}]
  %s4 = inlined_call_operand.hbm [shape: f32[4,1,128], index: 4, kind: input, shape index: {}]
  %s5 = inlined_call_operand.hbm [shape: f32[256,256], index: 5, kind: input, shape index: {}]
  %s6 = inlined_call_operand.hbm [shape: f32[32,128], index: 6, kind: output, shape index: {}]
  %s7 = sld [smem:[#allocation0]]
  $region54: #{tpu_custom_call.1} parent=0
    _
  %s9 = ssub.s32 1, %s7
  %s10 = scalar_select 0, %s9, %s7
  $region1: #{tpu_custom_call.1} parent=0
    #allocation2 [shape = 'u8[16384]{0}', space=vmem, size = 0x4000, scoped, tag = 'input window, operand 0, single buffered']
    #allocation3 [shape = 's32[1]{0}', space=sflag, size = 0x4, scoped, tag = 'scoped memory for tpu_custom_call.1']
    #allocation4 [shape = 's32[1]{0}', space=sflag, size = 0x4, scoped, tag = 'scoped memory for tpu_custom_call.1']
    #allocation5 [shape = 'u8[786432]{0}', space=vmem, size = 0xc0000, scoped, tag = 'input window, operand 1, single buffered']
    #allocation6 [shape = 's32[1]{0}', space=sflag, size = 0x4, scoped, tag = 'scoped memory for tpu_custom_call.1']
    #allocation7 [shape = 'u8[2048]{0}', space=vmem, size = 0x800, scoped, tag = 'input window, operand 2, single buffered']
    #allocation8 [shape = 'u8[2048]{0}', space=vmem, size = 0x800, scoped, tag = 'input window, operand 4, single buffered']
    #allocation9 [shape = 's32[1]{0}', space=sflag, size = 0x4, scoped, tag = 'scoped memory for tpu_custom_call.1']
    #allocation10 [shape = 'u8[262144]{0}', space=vmem, size = 0x40000, scoped, tag = 'input window, operand 5, single buffered']
    #allocation11 [shape = 'u8[16384]{0}', space=vmem, size = 0x4000, scoped, tag = 'output window, operand 0, single buffered']
    %11 = vsyncpa [#allocation3], 0
    %12 = vsyncpa [#allocation6], 0
    %13 = vsyncpa [#allocation9], 0
    %14 = vsyncpa [#allocation4], 0
    // Predicated region
    $region2: #{tpu_custom_call.1} parent=1 // pred_check
      _
    $region3: #{tpu_custom_call.1} parent=1 // pred_check_branch
      %16 = sbr.rel (0) target = $region5
    $region4: #{tpu_custom_call.1} parent=1 // pred_region
      %s18 = ssub.s32 512, 512
      %19 = vsyncadd [#allocation3], %s18
      %s20 = sshll.u32 [#allocation2], 4
      %s21 = int_to_ptr.vmem [resolvable:$true] %s20
      %26 = dma.hbm_to_vmem [thread:$0]  %s0, 512, %s21, [#allocation3], 128, 128, 8
    $region5: #{tpu_custom_call.1} parent=1 // pred_fallthru
      _
    // Predicated region
    $region6: #{tpu_custom_call.1} parent=1 // pred_check
      _
    $region7: #{tpu_custom_call.1} parent=1 // pred_check_branch
      %28 = sbr.rel (0) target = $region9
    $region8: #{tpu_custom_call.1} parent=1 // pred_region
      %s30 = ssub.s32 24576, 24576
      %31 = vsyncadd [#allocation6], %s30
      %s32 = sshll.u32 [#allocation5], 4
      %s33 = int_to_ptr.vmem [resolvable:$true] %s32
      %38 = dma.hbm_to_vmem [thread:$0]  %s1, 24576, %s33, [#allocation6], 128, 128, 8
    $region9: #{tpu_custom_call.1} parent=1 // pred_fallthru
      _
    // Predicated region
    $region10: #{tpu_custom_call.1} parent=1 // pred_check
      _
    $region11: #{tpu_custom_call.1} parent=1 // pred_check_branch
      %40 = sbr.rel (0) target = $region13
    $region12: #{tpu_custom_call.1} parent=1 // pred_region
      %s42 = ssub.s32 64, 64
      %43 = vsyncadd [#allocation6], %s42
      %s44 = sshll.u32 [#allocation7], 4
      %s45 = int_to_ptr.vmem [resolvable:$true] %s44
      %50 = dma.hbm_to_vmem [thread:$0]  %s2, 64, %s45, [#allocation6], 16, 16, 1
    $region13: #{tpu_custom_call.1} parent=1 // pred_fallthru
      _
    // Predicated region
    $region14: #{tpu_custom_call.1} parent=1 // pred_check
      _
    $region15: #{tpu_custom_call.1} parent=1 // pred_check_branch
      %52 = sbr.rel (0) target = $region17
    $region16: #{tpu_custom_call.1} parent=1 // pred_region
      _
    $region17: #{tpu_custom_call.1} parent=1 // pred_fallthru
      _
    // Predicated region
    $region18: #{tpu_custom_call.1} parent=1 // pred_check
      _
    $region19: #{tpu_custom_call.1} parent=1 // pred_check_branch
      %54 = sbr.rel (0) target = $region21
    $region20: #{tpu_custom_call.1} parent=1 // pred_region
      %s56 = ssub.s32 64, 64
      %57 = vsyncadd [#allocation9], %s56
      %s58 = sshll.u32 [#allocation8], 4
      %s59 = int_to_ptr.vmem [resolvable:$true] %s58
      %64 = dma.hbm_to_vmem [thread:$0]  %s4, 64, %s59, [#allocation9], 16, 16, 1
    $region21: #{tpu_custom_call.1} parent=1 // pred_fallthru
      _
    // Predicated region
    $region22: #{tpu_custom_call.1} parent=1 // pred_check
      _
    $region23: #{tpu_custom_call.1} parent=1 // pred_check_branch
      %66 = sbr.rel (0) target = $region25
    $region24: #{tpu_custom_call.1} parent=1 // pred_region
      %s68 = ssub.s32 8192, 8192
      %69 = vsyncadd [#allocation9], %s68
      %s70 = sshll.u32 [#allocation10], 4
      %s71 = int_to_ptr.vmem [resolvable:$true] %s70
      %76 = dma.hbm_to_vmem [thread:$0]  %s5, 8192, %s71, [#allocation9], 256, 256, 16
    $region25: #{tpu_custom_call.1} parent=1 // pred_fallthru
      _
    // Predicated region
    $region26: #{tpu_custom_call.1} parent=1 // pred_check
      _
    $region27: #{tpu_custom_call.1} parent=1 // pred_check_branch
      %78 = sbr.rel (0) target = $region29
    $region28: #{tpu_custom_call.1} parent=1 // pred_region
      %79 = dma.done [#allocation3], 512
    $region29: #{tpu_custom_call.1} parent=1 // pred_fallthru
      _
    // Predicated region
    $region30: #{tpu_custom_call.1} parent=1 // pred_check
      _
    $region31: #{tpu_custom_call.1} parent=1 // pred_check_branch
      %81 = sbr.rel (0) target = $region33
    $region32: #{tpu_custom_call.1} parent=1 // pred_region
      %82 = dma.done [#allocation6], 24576
    $region33: #{tpu_custom_call.1} parent=1 // pred_fallthru
      _
    // Predicated region
    $region34: #{tpu_custom_call.1} parent=1 // pred_check
      _
    $region35: #{tpu_custom_call.1} parent=1 // pred_check_branch
      %84 = sbr.rel (0) target = $region37
    $region36: #{tpu_custom_call.1} parent=1 // pred_region
      %85 = dma.done [#allocation6], 64
    $region37: #{tpu_custom_call.1} parent=1 // pred_fallthru
      _
    // Predicated region
    $region38: #{tpu_custom_call.1} parent=1 // pred_check
      _
    $region39: #{tpu_custom_call.1} parent=1 // pred_check_branch
      %87 = sbr.rel (0) target = $region41
    $region40: #{tpu_custom_call.1} parent=1 // pred_region
      %88 = dma.done [#allocation9], 64
    $region41: #{tpu_custom_call.1} parent=1 // pred_fallthru
      _
    // Predicated region
    $region42: #{tpu_custom_call.1} parent=1 // pred_check
      _
    $region43: #{tpu_custom_call.1} parent=1 // pred_check_branch
      %90 = sbr.rel (0) target = $region45
    $region44: #{tpu_custom_call.1} parent=1 // pred_region
      %91 = dma.done [#allocation9], 8192
    $region45: #{tpu_custom_call.1} parent=1 // pred_fallthru
      _
    %v92 = vlaneseq
    %v93 = vshrl.u32 %v92, 7
    %v94 = vadd.s32 %v93, 8
    %v95 = vadd.s32 %v93, 16
    %v96 = vadd.s32 %v93, 24
    %vm97 = vcmp.lt.s32.totalorder %v93, 0
    %v98 = vsub.s32 0, %v93
    %v99 = vsel %vm97, %v98, %v93
    %v100 = vshrl.u32 %v99, 4
    %v101 = vand.u32 %v99, 15
    %v102 = vsub.s32 0, %v101
    %v103 = vsel %vm97, %v102, %v101
    %vm104 = vcmp.lt.s32.totalorder %v94, 0
    %v105 = vsub.s32 0, %v94
    %v106 = vsel %vm104, %v105, %v94
    %v107 = vshrl.u32 %v106, 4
    %v108 = vand.u32 %v106, 15
    %v109 = vsub.s32 0, %v108
    %v110 = vsel %vm104, %v109, %v108
    %vm111 = vcmp.lt.s32.totalorder %v95, 0
    %v112 = vsub.s32 0, %v95
    %v113 = vsel %vm111, %v112, %v95
    %v114 = vshrl.u32 %v113, 4
    %v115 = vand.u32 %v113, 15
    %v116 = vsub.s32 0, %v115
    %v117 = vsel %vm111, %v116, %v115
    %vm118 = vcmp.lt.s32.totalorder %v96, 0
    %v119 = vsub.s32 0, %v96
    %v120 = vsel %vm118, %v119, %v96
    %v121 = vshrl.u32 %v120, 4
    %v122 = vand.u32 %v120, 15
    %v123 = vsub.s32 0, %v122
    %v124 = vsel %vm118, %v123, %v122
    %vm125 = vcmp.ne.s32.totalorder %v103, 0
    %vm126 = vcmp.ne.s32.totalorder %v110, 0
    %vm127 = vcmp.ne.s32.totalorder %v117, 0
    %vm128 = vcmp.ne.s32.totalorder %v124, 0
    %vm129 = vcmp.lt.s32.totalorder %v103, 0
    %vm130 = vcmp.lt.s32.totalorder %v110, 0
    %vm131 = vcmp.lt.s32.totalorder %v117, 0
    %vm132 = vcmp.lt.s32.totalorder %v124, 0
    %vm133 = vmand %vm129, %vm125
    %vm134 = vmand %vm130, %vm126
    %vm135 = vmand %vm131, %vm127
    %vm136 = vmand %vm132, %vm128
    %v137 = vadd.s32 %v103, 16
    %v138 = vadd.s32 %v110, 16
    %v139 = vadd.s32 %v117, 16
    %v140 = vadd.s32 %v124, 16
    %v141 = vsel %vm133, %v137, %v103
    %v142 = vsel %vm134, %v138, %v110
    %v143 = vsel %vm135, %v139, %v117
    %v144 = vsel %vm136, %v140, %v124
    %vm145 = vcmp.ne.s32.totalorder %v141, 0
    %vm146 = vcmp.ne.s32.totalorder %v142, 0
    %vm147 = vcmp.ne.s32.totalorder %v143, 0
    %vm148 = vcmp.ne.s32.totalorder %v144, 0
    %v149 = vsel %vm145, 1, 0
    %v150 = vsel %vm146, 1, 0
    %v151 = vsel %vm147, 1, 0
    %v152 = vsel %vm148, 1, 0
    %v153 = vcvt.s32.f32 %v149
    %v154 = vcvt.s32.f32 %v150
    %v155 = vcvt.s32.f32 %v151
    %v156 = vcvt.s32.f32 %v152
    %vm157 = vcmp.ne.s32.totalorder %v141, 15
    %vm158 = vcmp.ne.s32.totalorder %v142, 15
    %vm159 = vcmp.ne.s32.totalorder %v143, 15
    %vm160 = vcmp.ne.s32.totalorder %v144, 15
    %v161 = vsel %vm157, 1, 0
    %v162 = vsel %vm158, 1, 0
    %v163 = vsel %vm159, 1, 0
    %v164 = vsel %vm160, 1, 0
    %v165 = vcvt.s32.f32 %v161
    %v166 = vcvt.s32.f32 %v162
    %v167 = vcvt.s32.f32 %v163
    %v168 = vcvt.s32.f32 %v164
    %v169 = vld [vmem:[#allocation2] sm:$0xff]
    %v170 = vld [vmem:[#allocation2 + $0x8] sm:$0xff]
    %v171 = vld [vmem:[#allocation2 + $0x10] sm:$0xff]
    %v172 = vld [vmem:[#allocation2 + $0x18] sm:$0xff]
    %v173 = vrot.slane %v169, 7
    %v174 = vrot.slane %v170, 7
    %v175 = vrot.slane %v171, 7
    %v176 = vrot.slane %v172, 7
    %vm177 = vcmp.lt.s32.totalorder %v93, 1
    %v178 = vsel %vm177, %v175, %v176
    %v179 = vsel %vm177, %v174, %v175
    %v180 = vsel %vm177, %v173, %v174
    %v181 = vsel %vm177, %v176, %v173
    %v182 = vmul.f32 %v181, %v153
    %v183 = vmul.f32 %v180, %v154
    %v184 = vmul.f32 %v179, %v155
    %v185 = vmul.f32 %v178, %v156
    %v186 = vrot.slane %v169, 1
    %v187 = vrot.slane %v170, 1
    %v188 = vrot.slane %v171, 1
    %v189 = vrot.slane %v172, 1
    %vm190 = vcmp.lt.s32.totalorder %v93, 7
    %v191 = vsel %vm190, %v188, %v189
    %v192 = vsel %vm190, %v187, %v188
    %v193 = vsel %vm190, %v186, %v187
    %v194 = vsel %vm190, %v189, %v186
    %v195 = vmul.f32 %v193, %v165
    %v196 = vmul.f32 %v192, %v166
    %v197 = vmul.f32 %v191, %v167
    %v198 = vmul.f32 %v194, %v168
    %v199 = vld [vmem:[#allocation7] sm:$0x1]
    %v201 = vlaneseq
    %v202 = vshrl.u32 %v201, 7
    %v203 = vsub.s32 0, %v202
    %v204 = vrot.slane %v199, %v203
    %v206 = vadd.f32 %v204, 0.0
    %v207 = vld [vmem:[#allocation5] sm:$0xff]
    %v208 = vld [vmem:[#allocation5 + $0x8] sm:$0xff]
    %v209 = vld [vmem:[#allocation5 + $0x10] sm:$0xff]
    %v210 = vld [vmem:[#allocation5 + $0x18] sm:$0xff]
    %v211 = vld [vmem:[#allocation5 + $0x20] sm:$0xff]
    %v212 = vld [vmem:[#allocation5 + $0x28] sm:$0xff]
    %v213 = vld [vmem:[#allocation5 + $0x30] sm:$0xff]
    %v214 = vld [vmem:[#allocation5 + $0x38] sm:$0xff]
    %v215 = vld [vmem:[#allocation5 + $0x40] sm:$0xff]
    %v216 = vld [vmem:[#allocation5 + $0x48] sm:$0xff]
    %v217 = vld [vmem:[#allocation5 + $0x50] sm:$0xff]
    %v218 = vld [vmem:[#allocation5 + $0x58] sm:$0xff]
    %v219 = vld [vmem:[#allocation5 + $0x60] sm:$0xff]
    %v220 = vld [vmem:[#allocation5 + $0x68] sm:$0xff]
    %v221 = vld [vmem:[#allocation5 + $0x70] sm:$0xff]
    %v222 = vld [vmem:[#allocation5 + $0x78] sm:$0xff]
    %v223 = vld [vmem:[#allocation5 + $0x80] sm:$0xff]
    %v224 = vld [vmem:[#allocation5 + $0x88] sm:$0xff]
    %v225 = vld [vmem:[#allocation5 + $0x90] sm:$0xff]
    %v226 = vld [vmem:[#allocation5 + $0x98] sm:$0xff]
    %v227 = vld [vmem:[#allocation5 + $0xa0] sm:$0xff]
    %v228 = vld [vmem:[#allocation5 + $0xa8] sm:$0xff]
    %v229 = vld [vmem:[#allocation5 + $0xb0] sm:$0xff]
    %v230 = vld [vmem:[#allocation5 + $0xb8] sm:$0xff]
    %v231 = vld [vmem:[#allocation5 + $0xc0] sm:$0xff]
    %v232 = vld [vmem:[#allocation5 + $0xc8] sm:$0xff]
    %v233 = vld [vmem:[#allocation5 + $0xd0] sm:$0xff]
    %v234 = vld [vmem:[#allocation5 + $0xd8] sm:$0xff]
    %v235 = vld [vmem:[#allocation5 + $0xe0] sm:$0xff]
    %v236 = vld [vmem:[#allocation5 + $0xe8] sm:$0xff]
    %v237 = vld [vmem:[#allocation5 + $0xf0] sm:$0xff]
    %v238 = vld [vmem:[#allocation5 + $0xf8] sm:$0xff]
    %v239 = vld [vmem:[#allocation5 + $0x100] sm:$0xff]
    %v240 = vld [vmem:[#allocation5 + $0x108] sm:$0xff]
    %v241 = vld [vmem:[#allocation5 + $0x110] sm:$0xff]
    %v242 = vld [vmem:[#allocation5 + $0x118] sm:$0xff]
    %v243 = vld [vmem:[#allocation5 + $0x120] sm:$0xff]
    %v244 = vld [vmem:[#allocation5 + $0x128] sm:$0xff]
    %v245 = vld [vmem:[#allocation5 + $0x130] sm:$0xff]
    %v246 = vld [vmem:[#allocation5 + $0x138] sm:$0xff]
    %v247 = vld [vmem:[#allocation5 + $0x140] sm:$0xff]
    %v248 = vld [vmem:[#allocation5 + $0x148] sm:$0xff]
    %v249 = vld [vmem:[#allocation5 + $0x150] sm:$0xff]
    %v250 = vld [vmem:[#allocation5 + $0x158] sm:$0xff]
    %v251 = vld [vmem:[#allocation5 + $0x160] sm:$0xff]
    %v252 = vld [vmem:[#allocation5 + $0x168] sm:$0xff]
    %v253 = vld [vmem:[#allocation5 + $0x170] sm:$0xff]
    %v254 = vld [vmem:[#allocation5 + $0x178] sm:$0xff]
    %255 = vmatprep.subr.mxu0 0.0
    %256 = vmatpush1.msra.mxu0 %v222
    %257 = vmatprep.subr.mxu0 0.0
    %258 = vmatpush1.msra.mxu0 %v221
    %259 = vmatprep.subr.mxu0 0.0
    %260 = vmatpush1.msra.mxu0 %v220
    %261 = vmatprep.subr.mxu0 0.0
    %262 = vmatpush1.msra.mxu0 %v219
    %263 = vmatprep.subr.mxu0 0.0
    %264 = vmatpush1.msra.mxu0 %v218
    %265 = vmatprep.subr.mxu0 0.0
    %266 = vmatpush1.msra.mxu0 %v217
    %267 = vmatprep.subr.mxu0 0.0
    %268 = vmatpush1.msra.mxu0 %v216
    %269 = vmatprep.subr.mxu0 0.0
    %270 = vmatpush1.msra.mxu0 %v215
    %271 = vmatprep.subr.mxu0 0.0
    %272 = vmatpush1.msra.mxu0 %v214
    %273 = vmatprep.subr.mxu0 0.0
    %274 = vmatpush1.msra.mxu0 %v213
    %275 = vmatprep.subr.mxu0 0.0
    %276 = vmatpush1.msra.mxu0 %v212
    %277 = vmatprep.subr.mxu0 0.0
    %278 = vmatpush1.msra.mxu0 %v211
    %279 = vmatprep.subr.mxu0 0.0
    %280 = vmatpush1.msra.mxu0 %v210
    %281 = vmatprep.subr.mxu0 0.0
    %282 = vmatpush1.msra.mxu0 %v209
    %283 = vmatprep.subr.mxu0 0.0
    %284 = vmatpush1.msra.mxu0 %v208
    %285 = vmatprep.subr.mxu0 0.0
    %286 = vmatpush1.msra.mxu0 %v207
    %287 = vmatprep.subr.mxu0 0.0
    %288 = vmatpush2.msra.mxu0 %v238
    %289 = vmatprep.subr.mxu0 0.0
    %290 = vmatpush2.msra.mxu0 %v237
    %291 = vmatprep.subr.mxu0 0.0
    %292 = vmatpush2.msra.mxu0 %v236
    %293 = vmatprep.subr.mxu0 0.0
    %294 = vmatpush2.msra.mxu0 %v235
    %295 = vmatprep.subr.mxu0 0.0
    %296 = vmatpush2.msra.mxu0 %v234
    %297 = vmatprep.subr.mxu0 0.0
    %298 = vmatpush2.msra.mxu0 %v233
    %299 = vmatprep.subr.mxu0 0.0
    %300 = vmatpush2.msra.mxu0 %v232
    %301 = vmatprep.subr.mxu0 0.0
    %302 = vmatpush2.msra.mxu0 %v231
    %303 = vmatprep.subr.mxu0 0.0
    %304 = vmatpush2.msra.mxu0 %v230
    %305 = vmatprep.subr.mxu0 0.0
    %306 = vmatpush2.msra.mxu0 %v229
    %307 = vmatprep.subr.mxu0 0.0
    %308 = vmatpush2.msra.mxu0 %v228
    %309 = vmatprep.subr.mxu0 0.0
    %310 = vmatpush2.msra.mxu0 %v227
    %311 = vmatprep.subr.mxu0 0.0
    %312 = vmatpush2.msra.mxu0 %v226
    %313 = vmatprep.subr.mxu0 0.0
    %314 = vmatpush2.msra.mxu0 %v225
    %315 = vmatprep.subr.mxu0 0.0
    %316 = vmatpush2.msra.mxu0 %v224
    %317 = vmatprep.subr.mxu0 0.0
    %318 = vmatpush2.msra.mxu0 %v223
    %319 = vmatprep.mubr.f32.mxu0 %v169
    %320 = vmatmul.mubr.f32.gmra.mxu0 %v182
    %v321 = vpop.f32.mrf.mxu0
    %v322 = vadd.f32 0.0, %v321
    %v323 = vpop.f32.mrf.mxu0
    %324 = vmatprep.mubr.f32.mxu0 %v170
    %325 = vmatmul.mubr.f32.gmra.mxu0 %v183
    %v326 = vpop.f32.mrf.mxu0
    %v327 = vadd.f32 0.0, %v326
    %v328 = vpop.f32.mrf.mxu0
    %329 = vmatprep.mubr.f32.mxu0 %v171
    %330 = vmatmul.mubr.f32.gmra.mxu0 %v184
    %v331 = vpop.f32.mrf.mxu0
    %v332 = vadd.f32 0.0, %v331
    %v333 = vpop.f32.mrf.mxu0
    %334 = vmatprep.mubr.f32.mxu0 %v172
    %335 = vmatmul.mubr.f32.gmra.mxu0 %v185
    %v336 = vpop.f32.mrf.mxu0
    %v337 = vadd.f32 0.0, %v336
    %v338 = vpop.f32.mrf.mxu0
    %339 = vdwg.mxu0
    %340 = vmatprep.subr.mxu0 0.0
    %341 = vmatpush1.msra.mxu0 %v254
    %342 = vmatprep.subr.mxu0 0.0
    %343 = vmatpush1.msra.mxu0 %v253
    %344 = vmatprep.subr.mxu0 0.0
    %345 = vmatpush1.msra.mxu0 %v252
    %346 = vmatprep.subr.mxu0 0.0
    %347 = vmatpush1.msra.mxu0 %v251
    %348 = vmatprep.subr.mxu0 0.0
    %349 = vmatpush1.msra.mxu0 %v250
    %350 = vmatprep.subr.mxu0 0.0
    %351 = vmatpush1.msra.mxu0 %v249
    %352 = vmatprep.subr.mxu0 0.0
    %353 = vmatpush1.msra.mxu0 %v248
    %354 = vmatprep.subr.mxu0 0.0
    %355 = vmatpush1.msra.mxu0 %v247
    %356 = vmatprep.subr.mxu0 0.0
    %357 = vmatpush1.msra.mxu0 %v246
    %358 = vmatprep.subr.mxu0 0.0
    %359 = vmatpush1.msra.mxu0 %v245
    %360 = vmatprep.subr.mxu0 0.0
    %361 = vmatpush1.msra.mxu0 %v244
    %362 = vmatprep.subr.mxu0 0.0
    %363 = vmatpush1.msra.mxu0 %v243
    %364 = vmatprep.subr.mxu0 0.0
    %365 = vmatpush1.msra.mxu0 %v242
    %366 = vmatprep.subr.mxu0 0.0
    %367 = vmatpush1.msra.mxu0 %v241
    %368 = vmatprep.subr.mxu0 0.0
    %369 = vmatpush1.msra.mxu0 %v240
    %370 = vmatprep.subr.mxu0 0.0
    %371 = vmatpush1.msra.mxu0 %v239
    %372 = vmatprep.subr.mxu0 0.0
    %373 = vmatpush2.msra.mxu0 0.0
    %374 = vmatprep.subr.mxu0 0.0
    %375 = vmatpush2.msra.mxu0 0.0
    %376 = vmatprep.subr.mxu0 0.0
    %377 = vmatpush2.msra.mxu0 0.0
    %378 = vmatprep.subr.mxu0 0.0
    %379 = vmatpush2.msra.mxu0 0.0
    %380 = vmatprep.subr.mxu0 0.0
    %381 = vmatpush2.msra.mxu0 0.0
    %382 = vmatprep.subr.mxu0 0.0
    %383 = vmatpush2.msra.mxu0 0.0
    %384 = vmatprep.subr.mxu0 0.0
    %385 = vmatpush2.msra.mxu0 0.0
    %386 = vmatprep.subr.mxu0 0.0
    %387 = vmatpush2.msra.mxu0 0.0
    %388 = vmatprep.subr.mxu0 0.0
    %389 = vmatpush2.msra.mxu0 0.0
    %390 = vmatprep.subr.mxu0 0.0
    %391 = vmatpush2.msra.mxu0 0.0
    %392 = vmatprep.subr.mxu0 0.0
    %393 = vmatpush2.msra.mxu0 0.0
    %394 = vmatprep.subr.mxu0 0.0
    %395 = vmatpush2.msra.mxu0 0.0
    %396 = vmatprep.subr.mxu0 0.0
    %397 = vmatpush2.msra.mxu0 0.0
    %398 = vmatprep.subr.mxu0 0.0
    %399 = vmatpush2.msra.mxu0 0.0
    %400 = vmatprep.subr.mxu0 0.0
    %401 = vmatpush2.msra.mxu0 0.0
    %402 = vmatprep.subr.mxu0 0.0
    %403 = vmatpush2.msra.mxu0 0.0
    %404 = vmatprep.mubr.f32.mxu0 0.0
    %405 = vmatmul.mubr.f32.gmra.mxu0 %v195
    %v406 = vpop.f32.mrf.mxu0
    %v407 = vadd.f32 %v322, %v406
    %v408 = vpop.f32.mrf.mxu0
    %409 = vmatprep.mubr.f32.mxu0 0.0
    %410 = vmatmul.mubr.f32.gmra.mxu0 %v196
    %v411 = vpop.f32.mrf.mxu0
    %v412 = vadd.f32 %v327, %v411
    %v413 = vpop.f32.mrf.mxu0
    %414 = vmatprep.mubr.f32.mxu0 0.0
    %415 = vmatmul.mubr.f32.gmra.mxu0 %v197
    %v416 = vpop.f32.mrf.mxu0
    %v417 = vadd.f32 %v332, %v416
    %v418 = vpop.f32.mrf.mxu0
    %419 = vmatprep.mubr.f32.mxu0 0.0
    %420 = vmatmul.mubr.f32.gmra.mxu0 %v198
    %v421 = vpop.f32.mrf.mxu0
    %v422 = vadd.f32 %v337, %v421
    %v423 = vpop.f32.mrf.mxu0
    %424 = vdwg.mxu0
    %v425 = vadd.f32 %v206, %v407
    %v426 = vadd.f32 %v206, %v412
    %v427 = vadd.f32 %v206, %v417
    %v428 = vadd.f32 %v206, %v422
    %v429 = vadd.f32 %v425, %v426
    %v430 = vadd.f32 %v429, %v427
    %v431 = vadd.f32 %v430, %v428
    %v432 = vrot.slane %v431, 4
    %v433 = vadd.f32 %v431, %v432
    %v434 = vrot.slane %v433, 2
    %v435 = vadd.f32 %v433, %v434
    %v436 = vrot.slane %v435, 1
    %v437 = vadd.f32 %v435, %v436
    %v438 = vmul.f32 %v425, %v425
    %v439 = vmul.f32 %v426, %v426
    %v440 = vmul.f32 %v427, %v427
    %v441 = vmul.f32 %v428, %v428
    %v442 = vadd.f32 %v438, %v439
    %v443 = vadd.f32 %v442, %v440
    %v444 = vadd.f32 %v443, %v441
    %v445 = vrot.slane %v444, 4
    %v446 = vadd.f32 %v444, %v445
    %v447 = vrot.slane %v446, 2
    %v448 = vadd.f32 %v446, %v447
    %v449 = vrot.slane %v448, 1
    %v450 = vadd.f32 %v448, %v449
    %v451 = vld [vmem:[#allocation10] sm:$0xff]
    %v452 = vld [vmem:[#allocation10 + $0x8] sm:$0xff]
    %v453 = vld [vmem:[#allocation10 + $0x10] sm:$0xff]
    %v454 = vld [vmem:[#allocation10 + $0x18] sm:$0xff]
    %v455 = vld [vmem:[#allocation10 + $0x20] sm:$0xff]
    %v456 = vld [vmem:[#allocation10 + $0x28] sm:$0xff]
    %v457 = vld [vmem:[#allocation10 + $0x30] sm:$0xff]
    %v458 = vld [vmem:[#allocation10 + $0x38] sm:$0xff]
    %v459 = vld [vmem:[#allocation10 + $0x40] sm:$0xff]
    %v460 = vld [vmem:[#allocation10 + $0x48] sm:$0xff]
    %v461 = vld [vmem:[#allocation10 + $0x50] sm:$0xff]
    %v462 = vld [vmem:[#allocation10 + $0x58] sm:$0xff]
    %v463 = vld [vmem:[#allocation10 + $0x60] sm:$0xff]
    %v464 = vld [vmem:[#allocation10 + $0x68] sm:$0xff]
    %v465 = vld [vmem:[#allocation10 + $0x70] sm:$0xff]
    %v466 = vld [vmem:[#allocation10 + $0x78] sm:$0xff]
    %v467 = vld [vmem:[#allocation10 + $0x80] sm:$0xff]
    %v468 = vld [vmem:[#allocation10 + $0x88] sm:$0xff]
    %v469 = vld [vmem:[#allocation10 + $0x90] sm:$0xff]
    %v470 = vld [vmem:[#allocation10 + $0x98] sm:$0xff]
    %v471 = vld [vmem:[#allocation10 + $0xa0] sm:$0xff]
    %v472 = vld [vmem:[#allocation10 + $0xa8] sm:$0xff]
    %v473 = vld [vmem:[#allocation10 + $0xb0] sm:$0xff]
    %v474 = vld [vmem:[#allocation10 + $0xb8] sm:$0xff]
    %v475 = vld [vmem:[#allocation10 + $0xc0] sm:$0xff]
    %v476 = vld [vmem:[#allocation10 + $0xc8] sm:$0xff]
    %v477 = vld [vmem:[#allocation10 + $0xd0] sm:$0xff]
    %v478 = vld [vmem:[#allocation10 + $0xd8] sm:$0xff]
    %v479 = vld [vmem:[#allocation10 + $0xe0] sm:$0xff]
    %v480 = vld [vmem:[#allocation10 + $0xe8] sm:$0xff]
    %v481 = vld [vmem:[#allocation10 + $0xf0] sm:$0xff]
    %v482 = vld [vmem:[#allocation10 + $0xf8] sm:$0xff]
    %v483 = vld [vmem:[#allocation10 + $0x100] sm:$0xff]
    %v484 = vld [vmem:[#allocation10 + $0x108] sm:$0xff]
    %v485 = vld [vmem:[#allocation10 + $0x110] sm:$0xff]
    %v486 = vld [vmem:[#allocation10 + $0x118] sm:$0xff]
    %v487 = vld [vmem:[#allocation10 + $0x120] sm:$0xff]
    %v488 = vld [vmem:[#allocation10 + $0x128] sm:$0xff]
    %v489 = vld [vmem:[#allocation10 + $0x130] sm:$0xff]
    %v490 = vld [vmem:[#allocation10 + $0x138] sm:$0xff]
    %v491 = vld [vmem:[#allocation10 + $0x140] sm:$0xff]
    %v492 = vld [vmem:[#allocation10 + $0x148] sm:$0xff]
    %v493 = vld [vmem:[#allocation10 + $0x150] sm:$0xff]
    %v494 = vld [vmem:[#allocation10 + $0x158] sm:$0xff]
    %v495 = vld [vmem:[#allocation10 + $0x160] sm:$0xff]
    %v496 = vld [vmem:[#allocation10 + $0x168] sm:$0xff]
    %v497 = vld [vmem:[#allocation10 + $0x170] sm:$0xff]
    %v498 = vld [vmem:[#allocation10 + $0x178] sm:$0xff]
    %v499 = vld [vmem:[#allocation10 + $0x180] sm:$0xff]
    %v500 = vld [vmem:[#allocation10 + $0x188] sm:$0xff]
    %v501 = vld [vmem:[#allocation10 + $0x190] sm:$0xff]
    %v502 = vld [vmem:[#allocation10 + $0x198] sm:$0xff]
    %v503 = vld [vmem:[#allocation10 + $0x1a0] sm:$0xff]
    %v504 = vld [vmem:[#allocation10 + $0x1a8] sm:$0xff]
    %v505 = vld [vmem:[#allocation10 + $0x1b0] sm:$0xff]
    %v506 = vld [vmem:[#allocation10 + $0x1b8] sm:$0xff]
    %v507 = vld [vmem:[#allocation10 + $0x1c0] sm:$0xff]
    %v508 = vld [vmem:[#allocation10 + $0x1c8] sm:$0xff]
    %v509 = vld [vmem:[#allocation10 + $0x1d0] sm:$0xff]
    %v510 = vld [vmem:[#allocation10 + $0x1d8] sm:$0xff]
    %v511 = vld [vmem:[#allocation10 + $0x1e0] sm:$0xff]
    %v512 = vld [vmem:[#allocation10 + $0x1e8] sm:$0xff]
    %v513 = vld [vmem:[#allocation10 + $0x1f0] sm:$0xff]
    %v514 = vld [vmem:[#allocation10 + $0x1f8] sm:$0xff]
    %515 = vmatprep.subr.mxu0 %v482
    %516 = vmatpush1.msra.mxu0 %v481
    %517 = vmatprep.subr.mxu0 %v480
    %518 = vmatpush1.msra.mxu0 %v479
    %519 = vmatprep.subr.mxu0 %v478
    %520 = vmatpush1.msra.mxu0 %v477
    %521 = vmatprep.subr.mxu0 %v476
    %522 = vmatpush1.msra.mxu0 %v475
    %523 = vmatprep.subr.mxu0 %v474
    %524 = vmatpush1.msra.mxu0 %v473
    %525 = vmatprep.subr.mxu0 %v472
    %526 = vmatpush1.msra.mxu0 %v471
    %527 = vmatprep.subr.mxu0 %v470
    %528 = vmatpush1.msra.mxu0 %v469
    %529 = vmatprep.subr.mxu0 %v468
    %530 = vmatpush1.msra.mxu0 %v467
    %531 = vmatprep.subr.mxu0 %v466
    %532 = vmatpush1.msra.mxu0 %v465
    %533 = vmatprep.subr.mxu0 %v464
    %534 = vmatpush1.msra.mxu0 %v463
    %535 = vmatprep.subr.mxu0 %v462
    %536 = vmatpush1.msra.mxu0 %v461
    %537 = vmatprep.subr.mxu0 %v460
    %538 = vmatpush1.msra.mxu0 %v459
    %539 = vmatprep.subr.mxu0 %v458
    %540 = vmatpush1.msra.mxu0 %v457
    %541 = vmatprep.subr.mxu0 %v456
    %542 = vmatpush1.msra.mxu0 %v455
    %543 = vmatprep.subr.mxu0 %v454
    %544 = vmatpush1.msra.mxu0 %v453
    %545 = vmatprep.subr.mxu0 %v452
    %546 = vmatpush1.msra.mxu0 %v451
    %547 = vmatprep.subr.mxu0 %v514
    %548 = vmatpush2.msra.mxu0 %v513
    %549 = vmatprep.subr.mxu0 %v512
    %550 = vmatpush2.msra.mxu0 %v511
    %551 = vmatprep.subr.mxu0 %v510
    %552 = vmatpush2.msra.mxu0 %v509
    %553 = vmatprep.subr.mxu0 %v508
    %554 = vmatpush2.msra.mxu0 %v507
    %555 = vmatprep.subr.mxu0 %v506
    %556 = vmatpush2.msra.mxu0 %v505
    %557 = vmatprep.subr.mxu0 %v504
    %558 = vmatpush2.msra.mxu0 %v503
    %559 = vmatprep.subr.mxu0 %v502
    %560 = vmatpush2.msra.mxu0 %v501
    %561 = vmatprep.subr.mxu0 %v500
    %562 = vmatpush2.msra.mxu0 %v499
    %563 = vmatprep.subr.mxu0 %v498
    %564 = vmatpush2.msra.mxu0 %v497
    %565 = vmatprep.subr.mxu0 %v496
    %566 = vmatpush2.msra.mxu0 %v495
    %567 = vmatprep.subr.mxu0 %v494
    %568 = vmatpush2.msra.mxu0 %v493
    %569 = vmatprep.subr.mxu0 %v492
    %570 = vmatpush2.msra.mxu0 %v491
    %571 = vmatprep.subr.mxu0 %v490
    %572 = vmatpush2.msra.mxu0 %v489
    %573 = vmatprep.subr.mxu0 %v488
    %574 = vmatpush2.msra.mxu0 %v487
    %575 = vmatprep.subr.mxu0 %v486
    %576 = vmatpush2.msra.mxu0 %v485
    %577 = vmatprep.subr.mxu0 %v484
    %578 = vmatpush2.msra.mxu0 %v483
    %579 = vmatprep.mubr.f32.mxu0 %v450
    %580 = vmatmul.mubr.f32.gmra.mxu0 %v437
    %v581 = vpop.f32.mrf.mxu0
    %v582 = vadd.f32 0.0, %v581
    %v583 = vpop.f32.mrf.mxu0
    %v584 = vadd.f32 0.0, %v583
    %585 = vdwg.mxu0
    %v586 = vmul.f32 %v582, 0.001953125
    %v587 = vmul.f32 %v584, 0.001953125
    %v588 = vmul.f32 %v586, %v586
    %v589 = vsub.f32 %v587, %v588
    %v590 = vmax.f32 %v589, 0.0
    %v591 = vadd.f32 %v590, 1e-05
    %v592 = vrsqrt.pop %v591
    %v593 = vld [vmem:[%s3] sm:$0x1]
    %v594 = vmul.f32 %v593, %v592
    %v595 = vld [vmem:[#allocation8] sm:$0x1]
    %v596 = vmul.f32 %v586, %v594
    %v597 = vsub.f32 %v595, %v596
    %v598 = vadd.f32 %v169, 0.0
    %v599 = vadd.f32 %v170, 0.0
    %v600 = vadd.f32 %v171, 0.0
    %v601 = vadd.f32 %v172, 0.0
    %v603 = vlaneseq
    %v604 = vshrl.u32 %v603, 7
    %v605 = vsub.s32 0, %v604
    %v606 = vrot.slane %v594, %v605
    %v608 = vmul.f32 %v425, %v606
    %v609 = vmul.f32 %v426, %v606
    %v610 = vmul.f32 %v427, %v606
    %v611 = vmul.f32 %v428, %v606
    %v613 = vlaneseq
    %v614 = vshrl.u32 %v613, 7
    %v615 = vsub.s32 0, %v614
    %v616 = vrot.slane %v597, %v615
    %v618 = vadd.f32 %v608, %v616
    %v619 = vadd.f32 %v609, %v616
    %v620 = vadd.f32 %v610, %v616
    %v621 = vadd.f32 %v611, %v616
    %v622 = vmax.f32 %v618, 0.0
    %v623 = vmax.f32 %v619, 0.0
    %v624 = vmax.f32 %v620, 0.0
    %v625 = vmax.f32 %v621, 0.0
    %v626 = vrot.slane %v622, 7
    %v627 = vrot.slane %v623, 7
    %v628 = vrot.slane %v624, 7
    %v629 = vrot.slane %v625, 7
    %v630 = vsel %vm177, %v628, %v629
    %v631 = vsel %vm177, %v627, %v628
    %v632 = vsel %vm177, %v626, %v627
    %v633 = vsel %vm177, %v629, %v626
    %v634 = vmul.f32 %v633, %v153
    %v635 = vmul.f32 %v632, %v154
    %v636 = vmul.f32 %v631, %v155
    %v637 = vmul.f32 %v630, %v156
    %v638 = vrot.slane %v622, 1
    %v639 = vrot.slane %v623, 1
    %v640 = vrot.slane %v624, 1
    %v641 = vrot.slane %v625, 1
    %v642 = vsel %vm190, %v640, %v641
    %v643 = vsel %vm190, %v639, %v640
    %v644 = vsel %vm190, %v638, %v639
    %v645 = vsel %vm190, %v641, %v638
    %v646 = vmul.f32 %v644, %v165
    %v647 = vmul.f32 %v643, %v166
    %v648 = vmul.f32 %v642, %v167
    %v649 = vmul.f32 %v645, %v168
    %s650 = scalar_lea.vmem [#allocation7], 1
    %v651 = vld [vmem:[%s650] sm:$0x1]
    %v653 = vlaneseq
    %v654 = vshrl.u32 %v653, 7
    %v655 = vsub.s32 0, %v654
    %v656 = vrot.slane %v651, %v655
    %v658 = vadd.f32 %v598, %v656
    %v659 = vadd.f32 %v599, %v656
    %v660 = vadd.f32 %v600, %v656
    %v661 = vadd.f32 %v601, %v656
    %s662 = scalar_lea.vmem [#allocation5], 384
    %v663 = vld [vmem:[%s662] sm:$0xff]
    %v664 = vld [vmem:[%s662 + $0x8] sm:$0xff]
    %v665 = vld [vmem:[%s662 + $0x10] sm:$0xff]
    %v666 = vld [vmem:[%s662 + $0x18] sm:$0xff]
    %v667 = vld [vmem:[%s662 + $0x20] sm:$0xff]
    %v668 = vld [vmem:[%s662 + $0x28] sm:$0xff]
    %v669 = vld [vmem:[%s662 + $0x30] sm:$0xff]
    %v670 = vld [vmem:[%s662 + $0x38] sm:$0xff]
    %v671 = vld [vmem:[%s662 + $0x40] sm:$0xff]
    %v672 = vld [vmem:[%s662 + $0x48] sm:$0xff]
    %v673 = vld [vmem:[%s662 + $0x50] sm:$0xff]
    %v674 = vld [vmem:[%s662 + $0x58] sm:$0xff]
    %v675 = vld [vmem:[%s662 + $0x60] sm:$0xff]
    %v676 = vld [vmem:[%s662 + $0x68] sm:$0xff]
    %v677 = vld [vmem:[%s662 + $0x70] sm:$0xff]
    %v678 = vld [vmem:[%s662 + $0x78] sm:$0xff]
    %v679 = vld [vmem:[%s662 + $0x80] sm:$0xff]
    %v680 = vld [vmem:[%s662 + $0x88] sm:$0xff]
    %v681 = vld [vmem:[%s662 + $0x90] sm:$0xff]
    %v682 = vld [vmem:[%s662 + $0x98] sm:$0xff]
    %v683 = vld [vmem:[%s662 + $0xa0] sm:$0xff]
    %v684 = vld [vmem:[%s662 + $0xa8] sm:$0xff]
    %v685 = vld [vmem:[%s662 + $0xb0] sm:$0xff]
    %v686 = vld [vmem:[%s662 + $0xb8] sm:$0xff]
    %v687 = vld [vmem:[%s662 + $0xc0] sm:$0xff]
    %v688 = vld [vmem:[%s662 + $0xc8] sm:$0xff]
    %v689 = vld [vmem:[%s662 + $0xd0] sm:$0xff]
    %v690 = vld [vmem:[%s662 + $0xd8] sm:$0xff]
    %v691 = vld [vmem:[%s662 + $0xe0] sm:$0xff]
    %v692 = vld [vmem:[%s662 + $0xe8] sm:$0xff]
    %v693 = vld [vmem:[%s662 + $0xf0] sm:$0xff]
    %v694 = vld [vmem:[%s662 + $0xf8] sm:$0xff]
    %v695 = vld [vmem:[%s662 + $0x100] sm:$0xff]
    %v696 = vld [vmem:[%s662 + $0x108] sm:$0xff]
    %v697 = vld [vmem:[%s662 + $0x110] sm:$0xff]
    %v698 = vld [vmem:[%s662 + $0x118] sm:$0xff]
    %v699 = vld [vmem:[%s662 + $0x120] sm:$0xff]
    %v700 = vld [vmem:[%s662 + $0x128] sm:$0xff]
    %v701 = vld [vmem:[%s662 + $0x130] sm:$0xff]
    %v702 = vld [vmem:[%s662 + $0x138] sm:$0xff]
    %v703 = vld [vmem:[%s662 + $0x140] sm:$0xff]
    %v704 = vld [vmem:[%s662 + $0x148] sm:$0xff]
    %v705 = vld [vmem:[%s662 + $0x150] sm:$0xff]
    %v706 = vld [vmem:[%s662 + $0x158] sm:$0xff]
    %v707 = vld [vmem:[%s662 + $0x160] sm:$0xff]
    %v708 = vld [vmem:[%s662 + $0x168] sm:$0xff]
    %v709 = vld [vmem:[%s662 + $0x170] sm:$0xff]
    %v710 = vld [vmem:[%s662 + $0x178] sm:$0xff]
    %711 = vmatprep.subr.mxu0 0.0
    %712 = vmatpush1.msra.mxu0 %v678
    %713 = vmatprep.subr.mxu0 0.0
    %714 = vmatpush1.msra.mxu0 %v677
    %715 = vmatprep.subr.mxu0 0.0
    %716 = vmatpush1.msra.mxu0 %v676
    %717 = vmatprep.subr.mxu0 0.0
    %718 = vmatpush1.msra.mxu0 %v675
    %719 = vmatprep.subr.mxu0 0.0
    %720 = vmatpush1.msra.mxu0 %v674
    %721 = vmatprep.subr.mxu0 0.0
    %722 = vmatpush1.msra.mxu0 %v673
    %723 = vmatprep.subr.mxu0 0.0
    %724 = vmatpush1.msra.mxu0 %v672
    %725 = vmatprep.subr.mxu0 0.0
    %726 = vmatpush1.msra.mxu0 %v671
    %727 = vmatprep.subr.mxu0 0.0
    %728 = vmatpush1.msra.mxu0 %v670
    %729 = vmatprep.subr.mxu0 0.0
    %730 = vmatpush1.msra.mxu0 %v669
    %731 = vmatprep.subr.mxu0 0.0
    %732 = vmatpush1.msra.mxu0 %v668
    %733 = vmatprep.subr.mxu0 0.0
    %734 = vmatpush1.msra.mxu0 %v667
    %735 = vmatprep.subr.mxu0 0.0
    %736 = vmatpush1.msra.mxu0 %v666
    %737 = vmatprep.subr.mxu0 0.0
    %738 = vmatpush1.msra.mxu0 %v665
    %739 = vmatprep.subr.mxu0 0.0
    %740 = vmatpush1.msra.mxu0 %v664
    %741 = vmatprep.subr.mxu0 0.0
    %742 = vmatpush1.msra.mxu0 %v663
    %743 = vmatprep.subr.mxu0 0.0
    %744 = vmatpush2.msra.mxu0 %v694
    %745 = vmatprep.subr.mxu0 0.0
    %746 = vmatpush2.msra.mxu0 %v693
    %747 = vmatprep.subr.mxu0 0.0
    %748 = vmatpush2.msra.mxu0 %v692
    %749 = vmatprep.subr.mxu0 0.0
    %750 = vmatpush2.msra.mxu0 %v691
    %751 = vmatprep.subr.mxu0 0.0
    %752 = vmatpush2.msra.mxu0 %v690
    %753 = vmatprep.subr.mxu0 0.0
    %754 = vmatpush2.msra.mxu0 %v689
    %755 = vmatprep.subr.mxu0 0.0
    %756 = vmatpush2.msra.mxu0 %v688
    %757 = vmatprep.subr.mxu0 0.0
    %758 = vmatpush2.msra.mxu0 %v687
    %759 = vmatprep.subr.mxu0 0.0
    %760 = vmatpush2.msra.mxu0 %v686
    %761 = vmatprep.subr.mxu0 0.0
    %762 = vmatpush2.msra.mxu0 %v685
    %763 = vmatprep.subr.mxu0 0.0
    %764 = vmatpush2.msra.mxu0 %v684
    %765 = vmatprep.subr.mxu0 0.0
    %766 = vmatpush2.msra.mxu0 %v683
    %767 = vmatprep.subr.mxu0 0.0
    %768 = vmatpush2.msra.mxu0 %v682
    %769 = vmatprep.subr.mxu0 0.0
    %770 = vmatpush2.msra.mxu0 %v681
    %771 = vmatprep.subr.mxu0 0.0
    %772 = vmatpush2.msra.mxu0 %v680
    %773 = vmatprep.subr.mxu0 0.0
    %774 = vmatpush2.msra.mxu0 %v679
    %775 = vmatprep.mubr.f32.mxu0 %v622
    %776 = vmatmul.mubr.f32.gmra.mxu0 %v634
    %v777 = vpop.f32.mrf.mxu0
    %v778 = vadd.f32 0.0, %v777
    %v779 = vpop.f32.mrf.mxu0
    %780 = vmatprep.mubr.f32.mxu0 %v623
    %781 = vmatmul.mubr.f32.gmra.mxu0 %v635
    %v782 = vpop.f32.mrf.mxu0
    %v783 = vadd.f32 0.0, %v782
    %v784 = vpop.f32.mrf.mxu0
    %785 = vmatprep.mubr.f32.mxu0 %v624
    %786 = vmatmul.mubr.f32.gmra.mxu0 %v636
    %v787 = vpop.f32.mrf.mxu0
    %v788 = vadd.f32 0.0, %v787
    %v789 = vpop.f32.mrf.mxu0
    %790 = vmatprep.mubr.f32.mxu0 %v625
    %791 = vmatmul.mubr.f32.gmra.mxu0 %v637
    %v792 = vpop.f32.mrf.mxu0
    %v793 = vadd.f32 0.0, %v792
    %v794 = vpop.f32.mrf.mxu0
    %795 = vdwg.mxu0
    %796 = vmatprep.subr.mxu0 0.0
    %797 = vmatpush1.msra.mxu0 %v710
    %798 = vmatprep.subr.mxu0 0.0
    %799 = vmatpush1.msra.mxu0 %v709
    %800 = vmatprep.subr.mxu0 0.0
    %801 = vmatpush1.msra.mxu0 %v708
    %802 = vmatprep.subr.mxu0 0.0
    %803 = vmatpush1.msra.mxu0 %v707
    %804 = vmatprep.subr.mxu0 0.0
    %805 = vmatpush1.msra.mxu0 %v706
    %806 = vmatprep.subr.mxu0 0.0
    %807 = vmatpush1.msra.mxu0 %v705
    %808 = vmatprep.subr.mxu0 0.0
    %809 = vmatpush1.msra.mxu0 %v704
    %810 = vmatprep.subr.mxu0 0.0
    %811 = vmatpush1.msra.mxu0 %v703
    %812 = vmatprep.subr.mxu0 0.0
    %813 = vmatpush1.msra.mxu0 %v702
    %814 = vmatprep.subr.mxu0 0.0
    %815 = vmatpush1.msra.mxu0 %v701
    %816 = vmatprep.subr.mxu0 0.0
    %817 = vmatpush1.msra.mxu0 %v700
    %818 = vmatprep.subr.mxu0 0.0
    %819 = vmatpush1.msra.mxu0 %v699
    %820 = vmatprep.subr.mxu0 0.0
    %821 = vmatpush1.msra.mxu0 %v698
    %822 = vmatprep.subr.mxu0 0.0
    %823 = vmatpush1.msra.mxu0 %v697
    %824 = vmatprep.subr.mxu0 0.0
    %825 = vmatpush1.msra.mxu0 %v696
    %826 = vmatprep.subr.mxu0 0.0
    %827 = vmatpush1.msra.mxu0 %v695
    %828 = vmatprep.subr.mxu0 0.0
    %829 = vmatpush2.msra.mxu0 0.0
    %830 = vmatprep.subr.mxu0 0.0
    %831 = vmatpush2.msra.mxu0 0.0
    %832 = vmatprep.subr.mxu0 0.0
    %833 = vmatpush2.msra.mxu0 0.0
    %834 = vmatprep.subr.mxu0 0.0
    %835 = vmatpush2.msra.mxu0 0.0
    %836 = vmatprep.subr.mxu0 0.0
    %837 = vmatpush2.msra.mxu0 0.0
    %838 = vmatprep.subr.mxu0 0.0
    %839 = vmatpush2.msra.mxu0 0.0
    %840 = vmatprep.subr.mxu0 0.0
    %841 = vmatpush2.msra.mxu0 0.0
    %842 = vmatprep.subr.mxu0 0.0
    %843 = vmatpush2.msra.mxu0 0.0
    %844 = vmatprep.subr.mxu0 0.0
    %845 = vmatpush2.msra.mxu0 0.0
    %846 = vmatprep.subr.mxu0 0.0
    %847 = vmatpush2.msra.mxu0 0.0
    %848 = vmatprep.subr.mxu0 0.0
    %849 = vmatpush2.msra.mxu0 0.0
    %850 = vmatprep.subr.mxu0 0.0
    %851 = vmatpush2.msra.mxu0 0.0
    %852 = vmatprep.subr.mxu0 0.0
    %853 = vmatpush2.msra.mxu0 0.0
    %854 = vmatprep.subr.mxu0 0.0
    %855 = vmatpush2.msra.mxu0 0.0
    %856 = vmatprep.subr.mxu0 0.0
    %857 = vmatpush2.msra.mxu0 0.0
    %858 = vmatprep.subr.mxu0 0.0
    %859 = vmatpush2.msra.mxu0 0.0
    %860 = vmatprep.mubr.f32.mxu0 0.0
    %861 = vmatmul.mubr.f32.gmra.mxu0 %v646
    %v862 = vpop.f32.mrf.mxu0
    %v863 = vadd.f32 %v778, %v862
    %v864 = vpop.f32.mrf.mxu0
    %865 = vmatprep.mubr.f32.mxu0 0.0
    %866 = vmatmul.mubr.f32.gmra.mxu0 %v647
    %v867 = vpop.f32.mrf.mxu0
    %v868 = vadd.f32 %v783, %v867
    %v869 = vpop.f32.mrf.mxu0
    %870 = vmatprep.mubr.f32.mxu0 0.0
    %871 = vmatmul.mubr.f32.gmra.mxu0 %v648
    %v872 = vpop.f32.mrf.mxu0
    %v873 = vadd.f32 %v788, %v872
    %v874 = vpop.f32.mrf.mxu0
    %875 = vmatprep.mubr.f32.mxu0 0.0
    %876 = vmatmul.mubr.f32.gmra.mxu0 %v649
    %v877 = vpop.f32.mrf.mxu0
    %v878 = vadd.f32 %v793, %v877
    %v879 = vpop.f32.mrf.mxu0
    %880 = vdwg.mxu0
    %v881 = vadd.f32 %v658, %v863
    %v882 = vadd.f32 %v659, %v868
    %v883 = vadd.f32 %v660, %v873
    %v884 = vadd.f32 %v661, %v878
    %v885 = vadd.f32 %v881, %v882
    %v886 = vadd.f32 %v885, %v883
    %v887 = vadd.f32 %v886, %v884
    %v888 = vrot.slane %v887, 4
    %v889 = vadd.f32 %v887, %v888
    %v890 = vrot.slane %v889, 2
    %v891 = vadd.f32 %v889, %v890
    %v892 = vrot.slane %v891, 1
    %v893 = vadd.f32 %v891, %v892
    %v894 = vmul.f32 %v881, %v881
    %v895 = vmul.f32 %v882, %v882
    %v896 = vmul.f32 %v883, %v883
    %v897 = vmul.f32 %v884, %v884
    %v898 = vadd.f32 %v894, %v895
    %v899 = vadd.f32 %v898, %v896
    %v900 = vadd.f32 %v899, %v897
    %v901 = vrot.slane %v900, 4
    %v902 = vadd.f32 %v900, %v901
    %v903 = vrot.slane %v902, 2
    %v904 = vadd.f32 %v902, %v903
    %v905 = vrot.slane %v904, 1
    %v906 = vadd.f32 %v904, %v905
    %907 = vmatprep.subr.mxu0 %v482
    %908 = vmatpush1.msra.mxu0 %v481
    %909 = vmatprep.subr.mxu0 %v480
    %910 = vmatpush1.msra.mxu0 %v479
    %911 = vmatprep.subr.mxu0 %v478
    %912 = vmatpush1.msra.mxu0 %v477
    %913 = vmatprep.subr.mxu0 %v476
    %914 = vmatpush1.msra.mxu0 %v475
    %915 = vmatprep.subr.mxu0 %v474
    %916 = vmatpush1.msra.mxu0 %v473
    %917 = vmatprep.subr.mxu0 %v472
    %918 = vmatpush1.msra.mxu0 %v471
    %919 = vmatprep.subr.mxu0 %v470
    %920 = vmatpush1.msra.mxu0 %v469
    %921 = vmatprep.subr.mxu0 %v468
    %922 = vmatpush1.msra.mxu0 %v467
    %923 = vmatprep.subr.mxu0 %v466
    %924 = vmatpush1.msra.mxu0 %v465
    %925 = vmatprep.subr.mxu0 %v464
    %926 = vmatpush1.msra.mxu0 %v463
    %927 = vmatprep.subr.mxu0 %v462
    %928 = vmatpush1.msra.mxu0 %v461
    %929 = vmatprep.subr.mxu0 %v460
    %930 = vmatpush1.msra.mxu0 %v459
    %931 = vmatprep.subr.mxu0 %v458
    %932 = vmatpush1.msra.mxu0 %v457
    %933 = vmatprep.subr.mxu0 %v456
    %934 = vmatpush1.msra.mxu0 %v455
    %935 = vmatprep.subr.mxu0 %v454
    %936 = vmatpush1.msra.mxu0 %v453
    %937 = vmatprep.subr.mxu0 %v452
    %938 = vmatpush1.msra.mxu0 %v451
    %939 = vmatprep.subr.mxu0 %v514
    %940 = vmatpush2.msra.mxu0 %v513
    %941 = vmatprep.subr.mxu0 %v512
    %942 = vmatpush2.msra.mxu0 %v511
    %943 = vmatprep.subr.mxu0 %v510
    %944 = vmatpush2.msra.mxu0 %v509
    %945 = vmatprep.subr.mxu0 %v508
    %946 = vmatpush2.msra.mxu0 %v507
    %947 = vmatprep.subr.mxu0 %v506
    %948 = vmatpush2.msra.mxu0 %v505
    %949 = vmatprep.subr.mxu0 %v504
    %950 = vmatpush2.msra.mxu0 %v503
    %951 = vmatprep.subr.mxu0 %v502
    %952 = vmatpush2.msra.mxu0 %v501
    %953 = vmatprep.subr.mxu0 %v500
    %954 = vmatpush2.msra.mxu0 %v499
    %955 = vmatprep.subr.mxu0 %v498
    %956 = vmatpush2.msra.mxu0 %v497
    %957 = vmatprep.subr.mxu0 %v496
    %958 = vmatpush2.msra.mxu0 %v495
    %959 = vmatprep.subr.mxu0 %v494
    %960 = vmatpush2.msra.mxu0 %v493
    %961 = vmatprep.subr.mxu0 %v492
    %962 = vmatpush2.msra.mxu0 %v491
    %963 = vmatprep.subr.mxu0 %v490
    %964 = vmatpush2.msra.mxu0 %v489
    %965 = vmatprep.subr.mxu0 %v488
    %966 = vmatpush2.msra.mxu0 %v487
    %967 = vmatprep.subr.mxu0 %v486
    %968 = vmatpush2.msra.mxu0 %v485
    %969 = vmatprep.subr.mxu0 %v484
    %970 = vmatpush2.msra.mxu0 %v483
    %971 = vmatprep.mubr.f32.mxu0 %v906
    %972 = vmatmul.mubr.f32.gmra.mxu0 %v893
    %v973 = vpop.f32.mrf.mxu0
    %v974 = vadd.f32 0.0, %v973
    %v975 = vpop.f32.mrf.mxu0
    %v976 = vadd.f32 0.0, %v975
    %977 = vdwg.mxu0
    %v978 = vmul.f32 %v974, 0.001953125
    %v979 = vmul.f32 %v976, 0.001953125
    %v980 = vmul.f32 %v978, %v978
    %v981 = vsub.f32 %v979, %v980
    %v982 = vmax.f32 %v981, 0.0
    %v983 = vadd.f32 %v982, 1e-05
    %v984 = vrsqrt.pop %v983
    %s985 = scalar_lea.vmem %s3, 1
    %v986 = vld [vmem:[%s985] sm:$0x1]
    %v987 = vmul.f32 %v986, %v984
    %s988 = scalar_lea.vmem [#allocation8], 1
    %v989 = vld [vmem:[%s988] sm:$0x1]
    %v990 = vmul.f32 %v978, %v987
    %v991 = vsub.f32 %v989, %v990
    %v992 = vadd.f32 %v598, %v622
    %v993 = vadd.f32 %v599, %v623
    %v994 = vadd.f32 %v600, %v624
    %v995 = vadd.f32 %v601, %v625
    %v997 = vlaneseq
    %v998 = vshrl.u32 %v997, 7
    %v999 = vsub.s32 0, %v998
    %v1000 = vrot.slane %v987, %v999
    %v1002 = vmul.f32 %v881, %v1000
    %v1003 = vmul.f32 %v882, %v1000
    %v1004 = vmul.f32 %v883, %v1000
    %v1005 = vmul.f32 %v884, %v1000
    %v1007 = vlaneseq
    %v1008 = vshrl.u32 %v1007, 7
    %v1009 = vsub.s32 0, %v1008
    %v1010 = vrot.slane %v991, %v1009
    %v1012 = vadd.f32 %v1002, %v1010
    %v1013 = vadd.f32 %v1003, %v1010
    %v1014 = vadd.f32 %v1004, %v1010
    %v1015 = vadd.f32 %v1005, %v1010
    %v1016 = vmax.f32 %v1012, 0.0
    %v1017 = vmax.f32 %v1013, 0.0
    %v1018 = vmax.f32 %v1014, 0.0
    %v1019 = vmax.f32 %v1015, 0.0
    %v1020 = vrot.slane %v1016, 7
    %v1021 = vrot.slane %v1017, 7
    %v1022 = vrot.slane %v1018, 7
    %v1023 = vrot.slane %v1019, 7
    %v1024 = vsel %vm177, %v1022, %v1023
    %v1025 = vsel %vm177, %v1021, %v1022
    %v1026 = vsel %vm177, %v1020, %v1021
    %v1027 = vsel %vm177, %v1023, %v1020
    %v1028 = vmul.f32 %v1027, %v153
    %v1029 = vmul.f32 %v1026, %v154
    %v1030 = vmul.f32 %v1025, %v155
    %v1031 = vmul.f32 %v1024, %v156
    %v1032 = vrot.slane %v1016, 1
    %v1033 = vrot.slane %v1017, 1
    %v1034 = vrot.slane %v1018, 1
    %v1035 = vrot.slane %v1019, 1
    %v1036 = vsel %vm190, %v1034, %v1035
    %v1037 = vsel %vm190, %v1033, %v1034
    %v1038 = vsel %vm190, %v1032, %v1033
    %v1039 = vsel %vm190, %v1035, %v1032
    %v1040 = vmul.f32 %v1038, %v165
    %v1041 = vmul.f32 %v1037, %v166
    %v1042 = vmul.f32 %v1036, %v167
    %v1043 = vmul.f32 %v1039, %v168
    %s1044 = scalar_lea.vmem [#allocation7], 2
    %v1045 = vld [vmem:[%s1044] sm:$0x1]
    %v1047 = vlaneseq
    %v1048 = vshrl.u32 %v1047, 7
    %v1049 = vsub.s32 0, %v1048
    %v1050 = vrot.slane %v1045, %v1049
    %v1052 = vadd.f32 %v992, %v1050
    %v1053 = vadd.f32 %v993, %v1050
    %v1054 = vadd.f32 %v994, %v1050
    %v1055 = vadd.f32 %v995, %v1050
    %s1056 = scalar_lea.vmem [#allocation5], 768
    %v1057 = vld [vmem:[%s1056] sm:$0xff]
    %v1058 = vld [vmem:[%s1056 + $0x8] sm:$0xff]
    %v1059 = vld [vmem:[%s1056 + $0x10] sm:$0xff]
    %v1060 = vld [vmem:[%s1056 + $0x18] sm:$0xff]
    %v1061 = vld [vmem:[%s1056 + $0x20] sm:$0xff]
    %v1062 = vld [vmem:[%s1056 + $0x28] sm:$0xff]
    %v1063 = vld [vmem:[%s1056 + $0x30] sm:$0xff]
    %v1064 = vld [vmem:[%s1056 + $0x38] sm:$0xff]
    %v1065 = vld [vmem:[%s1056 + $0x40] sm:$0xff]
    %v1066 = vld [vmem:[%s1056 + $0x48] sm:$0xff]
    %v1067 = vld [vmem:[%s1056 + $0x50] sm:$0xff]
    %v1068 = vld [vmem:[%s1056 + $0x58] sm:$0xff]
    %v1069 = vld [vmem:[%s1056 + $0x60] sm:$0xff]
    %v1070 = vld [vmem:[%s1056 + $0x68] sm:$0xff]
    %v1071 = vld [vmem:[%s1056 + $0x70] sm:$0xff]
    %v1072 = vld [vmem:[%s1056 + $0x78] sm:$0xff]
    %v1073 = vld [vmem:[%s1056 + $0x80] sm:$0xff]
    %v1074 = vld [vmem:[%s1056 + $0x88] sm:$0xff]
    %v1075 = vld [vmem:[%s1056 + $0x90] sm:$0xff]
    %v1076 = vld [vmem:[%s1056 + $0x98] sm:$0xff]
    %v1077 = vld [vmem:[%s1056 + $0xa0] sm:$0xff]
    %v1078 = vld [vmem:[%s1056 + $0xa8] sm:$0xff]
    %v1079 = vld [vmem:[%s1056 + $0xb0] sm:$0xff]
    %v1080 = vld [vmem:[%s1056 + $0xb8] sm:$0xff]
    %v1081 = vld [vmem:[%s1056 + $0xc0] sm:$0xff]
    %v1082 = vld [vmem:[%s1056 + $0xc8] sm:$0xff]
    %v1083 = vld [vmem:[%s1056 + $0xd0] sm:$0xff]
    %v1084 = vld [vmem:[%s1056 + $0xd8] sm:$0xff]
    %v1085 = vld [vmem:[%s1056 + $0xe0] sm:$0xff]
    %v1086 = vld [vmem:[%s1056 + $0xe8] sm:$0xff]
    %v1087 = vld [vmem:[%s1056 + $0xf0] sm:$0xff]
    %v1088 = vld [vmem:[%s1056 + $0xf8] sm:$0xff]
    %v1089 = vld [vmem:[%s1056 + $0x100] sm:$0xff]
    %v1090 = vld [vmem:[%s1056 + $0x108] sm:$0xff]
    %v1091 = vld [vmem:[%s1056 + $0x110] sm:$0xff]
    %v1092 = vld [vmem:[%s1056 + $0x118] sm:$0xff]
    %v1093 = vld [vmem:[%s1056 + $0x120] sm:$0xff]
    %v1094 = vld [vmem:[%s1056 + $0x128] sm:$0xff]
    %v1095 = vld [vmem:[%s1056 + $0x130] sm:$0xff]
    %v1096 = vld [vmem:[%s1056 + $0x138] sm:$0xff]
    %v1097 = vld [vmem:[%s1056 + $0x140] sm:$0xff]
    %v1098 = vld [vmem:[%s1056 + $0x148] sm:$0xff]
    %v1099 = vld [vmem:[%s1056 + $0x150] sm:$0xff]
    %v1100 = vld [vmem:[%s1056 + $0x158] sm:$0xff]
    %v1101 = vld [vmem:[%s1056 + $0x160] sm:$0xff]
    %v1102 = vld [vmem:[%s1056 + $0x168] sm:$0xff]
    %v1103 = vld [vmem:[%s1056 + $0x170] sm:$0xff]
    %v1104 = vld [vmem:[%s1056 + $0x178] sm:$0xff]
    %1105 = vmatprep.subr.mxu0 0.0
    %1106 = vmatpush1.msra.mxu0 %v1072
    %1107 = vmatprep.subr.mxu0 0.0
    %1108 = vmatpush1.msra.mxu0 %v1071
    %1109 = vmatprep.subr.mxu0 0.0
    %1110 = vmatpush1.msra.mxu0 %v1070
    %1111 = vmatprep.subr.mxu0 0.0
    %1112 = vmatpush1.msra.mxu0 %v1069
    %1113 = vmatprep.subr.mxu0 0.0
    %1114 = vmatpush1.msra.mxu0 %v1068
    %1115 = vmatprep.subr.mxu0 0.0
    %1116 = vmatpush1.msra.mxu0 %v1067
    %1117 = vmatprep.subr.mxu0 0.0
    %1118 = vmatpush1.msra.mxu0 %v1066
    %1119 = vmatprep.subr.mxu0 0.0
    %1120 = vmatpush1.msra.mxu0 %v1065
    %1121 = vmatprep.subr.mxu0 0.0
    %1122 = vmatpush1.msra.mxu0 %v1064
    %1123 = vmatprep.subr.mxu0 0.0
    %1124 = vmatpush1.msra.mxu0 %v1063
    %1125 = vmatprep.subr.mxu0 0.0
    %1126 = vmatpush1.msra.mxu0 %v1062
    %1127 = vmatprep.subr.mxu0 0.0
    %1128 = vmatpush1.msra.mxu0 %v1061
    %1129 = vmatprep.subr.mxu0 0.0
    %1130 = vmatpush1.msra.mxu0 %v1060
    %1131 = vmatprep.subr.mxu0 0.0
    %1132 = vmatpush1.msra.mxu0 %v1059
    %1133 = vmatprep.subr.mxu0 0.0
    %1134 = vmatpush1.msra.mxu0 %v1058
    %1135 = vmatprep.subr.mxu0 0.0
    %1136 = vmatpush1.msra.mxu0 %v1057
    %1137 = vmatprep.subr.mxu0 0.0
    %1138 = vmatpush2.msra.mxu0 %v1088
    %1139 = vmatprep.subr.mxu0 0.0
    %1140 = vmatpush2.msra.mxu0 %v1087
    %1141 = vmatprep.subr.mxu0 0.0
    %1142 = vmatpush2.msra.mxu0 %v1086
    %1143 = vmatprep.subr.mxu0 0.0
    %1144 = vmatpush2.msra.mxu0 %v1085
    %1145 = vmatprep.subr.mxu0 0.0
    %1146 = vmatpush2.msra.mxu0 %v1084
    %1147 = vmatprep.subr.mxu0 0.0
    %1148 = vmatpush2.msra.mxu0 %v1083
    %1149 = vmatprep.subr.mxu0 0.0
    %1150 = vmatpush2.msra.mxu0 %v1082
    %1151 = vmatprep.subr.mxu0 0.0
    %1152 = vmatpush2.msra.mxu0 %v1081
    %1153 = vmatprep.subr.mxu0 0.0
    %1154 = vmatpush2.msra.mxu0 %v1080
    %1155 = vmatprep.subr.mxu0 0.0
    %1156 = vmatpush2.msra.mxu0 %v1079
    %1157 = vmatprep.subr.mxu0 0.0
    %1158 = vmatpush2.msra.mxu0 %v1078
    %1159 = vmatprep.subr.mxu0 0.0
    %1160 = vmatpush2.msra.mxu0 %v1077
    %1161 = vmatprep.subr.mxu0 0.0
    %1162 = vmatpush2.msra.mxu0 %v1076
    %1163 = vmatprep.subr.mxu0 0.0
    %1164 = vmatpush2.msra.mxu0 %v1075
    %1165 = vmatprep.subr.mxu0 0.0
    %1166 = vmatpush2.msra.mxu0 %v1074
    %1167 = vmatprep.subr.mxu0 0.0
    %1168 = vmatpush2.msra.mxu0 %v1073
    %1169 = vmatprep.mubr.f32.mxu0 %v1016
    %1170 = vmatmul.mubr.f32.gmra.mxu0 %v1028
    %v1171 = vpop.f32.mrf.mxu0
    %v1172 = vadd.f32 0.0, %v1171
    %v1173 = vpop.f32.mrf.mxu0
    %1174 = vmatprep.mubr.f32.mxu0 %v1017
    %1175 = vmatmul.mubr.f32.gmra.mxu0 %v1029
    %v1176 = vpop.f32.mrf.mxu0
    %v1177 = vadd.f32 0.0, %v1176
    %v1178 = vpop.f32.mrf.mxu0
    %1179 = vmatprep.mubr.f32.mxu0 %v1018
    %1180 = vmatmul.mubr.f32.gmra.mxu0 %v1030
    %v1181 = vpop.f32.mrf.mxu0
    %v1182 = vadd.f32 0.0, %v1181
    %v1183 = vpop.f32.mrf.mxu0
    %1184 = vmatprep.mubr.f32.mxu0 %v1019
    %1185 = vmatmul.mubr.f32.gmra.mxu0 %v1031
    %v1186 = vpop.f32.mrf.mxu0
    %v1187 = vadd.f32 0.0, %v1186
    %v1188 = vpop.f32.mrf.mxu0
    %1189 = vdwg.mxu0
    %1190 = vmatprep.subr.mxu0 0.0
    %1191 = vmatpush1.msra.mxu0 %v1104
    %1192 = vmatprep.subr.mxu0 0.0
    %1193 = vmatpush1.msra.mxu0 %v1103
    %1194 = vmatprep.subr.mxu0 0.0
    %1195 = vmatpush1.msra.mxu0 %v1102
    %1196 = vmatprep.subr.mxu0 0.0
    %1197 = vmatpush1.msra.mxu0 %v1101
    %1198 = vmatprep.subr.mxu0 0.0
    %1199 = vmatpush1.msra.mxu0 %v1100
    %1200 = vmatprep.subr.mxu0 0.0
    %1201 = vmatpush1.msra.mxu0 %v1099
    %1202 = vmatprep.subr.mxu0 0.0
    %1203 = vmatpush1.msra.mxu0 %v1098
    %1204 = vmatprep.subr.mxu0 0.0
    %1205 = vmatpush1.msra.mxu0 %v1097
    %1206 = vmatprep.subr.mxu0 0.0
    %1207 = vmatpush1.msra.mxu0 %v1096
    %1208 = vmatprep.subr.mxu0 0.0
    %1209 = vmatpush1.msra.mxu0 %v1095
    %1210 = vmatprep.subr.mxu0 0.0
    %1211 = vmatpush1.msra.mxu0 %v1094
    %1212 = vmatprep.subr.mxu0 0.0
    %1213 = vmatpush1.msra.mxu0 %v1093
    %1214 = vmatprep.subr.mxu0 0.0
    %1215 = vmatpush1.msra.mxu0 %v1092
    %1216 = vmatprep.subr.mxu0 0.0
    %1217 = vmatpush1.msra.mxu0 %v1091
    %1218 = vmatprep.subr.mxu0 0.0
    %1219 = vmatpush1.msra.mxu0 %v1090
    %1220 = vmatprep.subr.mxu0 0.0
    %1221 = vmatpush1.msra.mxu0 %v1089
    %1222 = vmatprep.subr.mxu0 0.0
    %1223 = vmatpush2.msra.mxu0 0.0
    %1224 = vmatprep.subr.mxu0 0.0
    %1225 = vmatpush2.msra.mxu0 0.0
    %1226 = vmatprep.subr.mxu0 0.0
    %1227 = vmatpush2.msra.mxu0 0.0
    %1228 = vmatprep.subr.mxu0 0.0
    %1229 = vmatpush2.msra.mxu0 0.0
    %1230 = vmatprep.subr.mxu0 0.0
    %1231 = vmatpush2.msra.mxu0 0.0
    %1232 = vmatprep.subr.mxu0 0.0
    %1233 = vmatpush2.msra.mxu0 0.0
    %1234 = vmatprep.subr.mxu0 0.0
    %1235 = vmatpush2.msra.mxu0 0.0
    %1236 = vmatprep.subr.mxu0 0.0
    %1237 = vmatpush2.msra.mxu0 0.0
    %1238 = vmatprep.subr.mxu0 0.0
    %1239 = vmatpush2.msra.mxu0 0.0
    %1240 = vmatprep.subr.mxu0 0.0
    %1241 = vmatpush2.msra.mxu0 0.0
    %1242 = vmatprep.subr.mxu0 0.0
    %1243 = vmatpush2.msra.mxu0 0.0
    %1244 = vmatprep.subr.mxu0 0.0
    %1245 = vmatpush2.msra.mxu0 0.0
    %1246 = vmatprep.subr.mxu0 0.0
    %1247 = vmatpush2.msra.mxu0 0.0
    %1248 = vmatprep.subr.mxu0 0.0
    %1249 = vmatpush2.msra.mxu0 0.0
    %1250 = vmatprep.subr.mxu0 0.0
    %1251 = vmatpush2.msra.mxu0 0.0
    %1252 = vmatprep.subr.mxu0 0.0
    %1253 = vmatpush2.msra.mxu0 0.0
    %1254 = vmatprep.mubr.f32.mxu0 0.0
    %1255 = vmatmul.mubr.f32.gmra.mxu0 %v1040
    %v1256 = vpop.f32.mrf.mxu0
    %v1257 = vadd.f32 %v1172, %v1256
    %v1258 = vpop.f32.mrf.mxu0
    %1259 = vmatprep.mubr.f32.mxu0 0.0
    %1260 = vmatmul.mubr.f32.gmra.mxu0 %v1041
    %v1261 = vpop.f32.mrf.mxu0
    %v1262 = vadd.f32 %v1177, %v1261
    %v1263 = vpop.f32.mrf.mxu0
    %1264 = vmatprep.mubr.f32.mxu0 0.0
    %1265 = vmatmul.mubr.f32.gmra.mxu0 %v1042
    %v1266 = vpop.f32.mrf.mxu0
    %v1267 = vadd.f32 %v1182, %v1266
    %v1268 = vpop.f32.mrf.mxu0
    %1269 = vmatprep.mubr.f32.mxu0 0.0
    %1270 = vmatmul.mubr.f32.gmra.mxu0 %v1043
    %v1271 = vpop.f32.mrf.mxu0
    %v1272 = vadd.f32 %v1187, %v1271
    %v1273 = vpop.f32.mrf.mxu0
    %1274 = vdwg.mxu0
    %v1275 = vadd.f32 %v1052, %v1257
    %v1276 = vadd.f32 %v1053, %v1262
    %v1277 = vadd.f32 %v1054, %v1267
    %v1278 = vadd.f32 %v1055, %v1272
    %v1279 = vadd.f32 %v1275, %v1276
    %v1280 = vadd.f32 %v1279, %v1277
    %v1281 = vadd.f32 %v1280, %v1278
    %v1282 = vrot.slane %v1281, 4
    %v1283 = vadd.f32 %v1281, %v1282
    %v1284 = vrot.slane %v1283, 2
    %v1285 = vadd.f32 %v1283, %v1284
    %v1286 = vrot.slane %v1285, 1
    %v1287 = vadd.f32 %v1285, %v1286
    %v1288 = vmul.f32 %v1275, %v1275
    %v1289 = vmul.f32 %v1276, %v1276
    %v1290 = vmul.f32 %v1277, %v1277
    %v1291 = vmul.f32 %v1278, %v1278
    %v1292 = vadd.f32 %v1288, %v1289
    %v1293 = vadd.f32 %v1292, %v1290
    %v1294 = vadd.f32 %v1293, %v1291
    %v1295 = vrot.slane %v1294, 4
    %v1296 = vadd.f32 %v1294, %v1295
    %v1297 = vrot.slane %v1296, 2
    %v1298 = vadd.f32 %v1296, %v1297
    %v1299 = vrot.slane %v1298, 1
    %v1300 = vadd.f32 %v1298, %v1299
    %1301 = vmatprep.subr.mxu0 %v482
    %1302 = vmatpush1.msra.mxu0 %v481
    %1303 = vmatprep.subr.mxu0 %v480
    %1304 = vmatpush1.msra.mxu0 %v479
    %1305 = vmatprep.subr.mxu0 %v478
    %1306 = vmatpush1.msra.mxu0 %v477
    %1307 = vmatprep.subr.mxu0 %v476
    %1308 = vmatpush1.msra.mxu0 %v475
    %1309 = vmatprep.subr.mxu0 %v474
    %1310 = vmatpush1.msra.mxu0 %v473
    %1311 = vmatprep.subr.mxu0 %v472
    %1312 = vmatpush1.msra.mxu0 %v471
    %1313 = vmatprep.subr.mxu0 %v470
    %1314 = vmatpush1.msra.mxu0 %v469
    %1315 = vmatprep.subr.mxu0 %v468
    %1316 = vmatpush1.msra.mxu0 %v467
    %1317 = vmatprep.subr.mxu0 %v466
    %1318 = vmatpush1.msra.mxu0 %v465
    %1319 = vmatprep.subr.mxu0 %v464
    %1320 = vmatpush1.msra.mxu0 %v463
    %1321 = vmatprep.subr.mxu0 %v462
    %1322 = vmatpush1.msra.mxu0 %v461
    %1323 = vmatprep.subr.mxu0 %v460
    %1324 = vmatpush1.msra.mxu0 %v459
    %1325 = vmatprep.subr.mxu0 %v458
    %1326 = vmatpush1.msra.mxu0 %v457
    %1327 = vmatprep.subr.mxu0 %v456
    %1328 = vmatpush1.msra.mxu0 %v455
    %1329 = vmatprep.subr.mxu0 %v454
    %1330 = vmatpush1.msra.mxu0 %v453
    %1331 = vmatprep.subr.mxu0 %v452
    %1332 = vmatpush1.msra.mxu0 %v451
    %1333 = vmatprep.subr.mxu0 %v514
    %1334 = vmatpush2.msra.mxu0 %v513
    %1335 = vmatprep.subr.mxu0 %v512
    %1336 = vmatpush2.msra.mxu0 %v511
    %1337 = vmatprep.subr.mxu0 %v510
    %1338 = vmatpush2.msra.mxu0 %v509
    %1339 = vmatprep.subr.mxu0 %v508
    %1340 = vmatpush2.msra.mxu0 %v507
    %1341 = vmatprep.subr.mxu0 %v506
    %1342 = vmatpush2.msra.mxu0 %v505
    %1343 = vmatprep.subr.mxu0 %v504
    %1344 = vmatpush2.msra.mxu0 %v503
    %1345 = vmatprep.subr.mxu0 %v502
    %1346 = vmatpush2.msra.mxu0 %v501
    %1347 = vmatprep.subr.mxu0 %v500
    %1348 = vmatpush2.msra.mxu0 %v499
    %1349 = vmatprep.subr.mxu0 %v498
    %1350 = vmatpush2.msra.mxu0 %v497
    %1351 = vmatprep.subr.mxu0 %v496
    %1352 = vmatpush2.msra.mxu0 %v495
    %1353 = vmatprep.subr.mxu0 %v494
    %1354 = vmatpush2.msra.mxu0 %v493
    %1355 = vmatprep.subr.mxu0 %v492
    %1356 = vmatpush2.msra.mxu0 %v491
    %1357 = vmatprep.subr.mxu0 %v490
    %1358 = vmatpush2.msra.mxu0 %v489
    %1359 = vmatprep.subr.mxu0 %v488
    %1360 = vmatpush2.msra.mxu0 %v487
    %1361 = vmatprep.subr.mxu0 %v486
    %1362 = vmatpush2.msra.mxu0 %v485
    %1363 = vmatprep.subr.mxu0 %v484
    %1364 = vmatpush2.msra.mxu0 %v483
    %1365 = vmatprep.mubr.f32.mxu0 %v1300
    %1366 = vmatmul.mubr.f32.gmra.mxu0 %v1287
    %v1367 = vpop.f32.mrf.mxu0
    %v1368 = vadd.f32 0.0, %v1367
    %v1369 = vpop.f32.mrf.mxu0
    %v1370 = vadd.f32 0.0, %v1369
    %1371 = vdwg.mxu0
    %v1372 = vmul.f32 %v1368, 0.001953125
    %v1373 = vmul.f32 %v1370, 0.001953125
    %v1374 = vmul.f32 %v1372, %v1372
    %v1375 = vsub.f32 %v1373, %v1374
    %v1376 = vmax.f32 %v1375, 0.0
    %v1377 = vadd.f32 %v1376, 1e-05
    %v1378 = vrsqrt.pop %v1377
    %s1379 = scalar_lea.vmem %s3, 2
    %v1380 = vld [vmem:[%s1379] sm:$0x1]
    %v1381 = vmul.f32 %v1380, %v1378
    %s1382 = scalar_lea.vmem [#allocation8], 2
    %v1383 = vld [vmem:[%s1382] sm:$0x1]
    %v1384 = vmul.f32 %v1372, %v1381
    %v1385 = vsub.f32 %v1383, %v1384
    %v1386 = vadd.f32 %v992, %v1016
    %v1387 = vadd.f32 %v993, %v1017
    %v1388 = vadd.f32 %v994, %v1018
    %v1389 = vadd.f32 %v995, %v1019
    %v1391 = vlaneseq
    %v1392 = vshrl.u32 %v1391, 7
    %v1393 = vsub.s32 0, %v1392
    %v1394 = vrot.slane %v1381, %v1393
    %v1396 = vmul.f32 %v1275, %v1394
    %v1397 = vmul.f32 %v1276, %v1394
    %v1398 = vmul.f32 %v1277, %v1394
    %v1399 = vmul.f32 %v1278, %v1394
    %v1401 = vlaneseq
    %v1402 = vshrl.u32 %v1401, 7
    %v1403 = vsub.s32 0, %v1402
    %v1404 = vrot.slane %v1385, %v1403
    %v1406 = vadd.f32 %v1396, %v1404
    %v1407 = vadd.f32 %v1397, %v1404
    %v1408 = vadd.f32 %v1398, %v1404
    %v1409 = vadd.f32 %v1399, %v1404
    %v1410 = vmax.f32 %v1406, 0.0
    %v1411 = vmax.f32 %v1407, 0.0
    %v1412 = vmax.f32 %v1408, 0.0
    %v1413 = vmax.f32 %v1409, 0.0
    %v1414 = vrot.slane %v1410, 7
    %v1415 = vrot.slane %v1411, 7
    %v1416 = vrot.slane %v1412, 7
    %v1417 = vrot.slane %v1413, 7
    %v1418 = vsel %vm177, %v1416, %v1417
    %v1419 = vsel %vm177, %v1415, %v1416
    %v1420 = vsel %vm177, %v1414, %v1415
    %v1421 = vsel %vm177, %v1417, %v1414
    %v1422 = vmul.f32 %v1421, %v153
    %v1423 = vmul.f32 %v1420, %v154
    %v1424 = vmul.f32 %v1419, %v155
    %v1425 = vmul.f32 %v1418, %v156
    %v1426 = vrot.slane %v1410, 1
    %v1427 = vrot.slane %v1411, 1
    %v1428 = vrot.slane %v1412, 1
    %v1429 = vrot.slane %v1413, 1
    %v1430 = vsel %vm190, %v1428, %v1429
    %v1431 = vsel %vm190, %v1427, %v1428
    %v1432 = vsel %vm190, %v1426, %v1427
    %v1433 = vsel %vm190, %v1429, %v1426
    %v1434 = vmul.f32 %v1432, %v165
    %v1435 = vmul.f32 %v1431, %v166
    %v1436 = vmul.f32 %v1430, %v167
    %v1437 = vmul.f32 %v1433, %v168
    %s1438 = scalar_lea.vmem [#allocation7], 3
    %v1439 = vld [vmem:[%s1438] sm:$0x1]
    %v1441 = vlaneseq
    %v1442 = vshrl.u32 %v1441, 7
    %v1443 = vsub.s32 0, %v1442
    %v1444 = vrot.slane %v1439, %v1443
    %v1446 = vadd.f32 %v1386, %v1444
    %v1447 = vadd.f32 %v1387, %v1444
    %v1448 = vadd.f32 %v1388, %v1444
    %v1449 = vadd.f32 %v1389, %v1444
    %s1450 = scalar_lea.vmem [#allocation5], 1152
    %v1451 = vld [vmem:[%s1450] sm:$0xff]
    %v1452 = vld [vmem:[%s1450 + $0x8] sm:$0xff]
    %v1453 = vld [vmem:[%s1450 + $0x10] sm:$0xff]
    %v1454 = vld [vmem:[%s1450 + $0x18] sm:$0xff]
    %v1455 = vld [vmem:[%s1450 + $0x20] sm:$0xff]
    %v1456 = vld [vmem:[%s1450 + $0x28] sm:$0xff]
    %v1457 = vld [vmem:[%s1450 + $0x30] sm:$0xff]
    %v1458 = vld [vmem:[%s1450 + $0x38] sm:$0xff]
    %v1459 = vld [vmem:[%s1450 + $0x40] sm:$0xff]
    %v1460 = vld [vmem:[%s1450 + $0x48] sm:$0xff]
    %v1461 = vld [vmem:[%s1450 + $0x50] sm:$0xff]
    %v1462 = vld [vmem:[%s1450 + $0x58] sm:$0xff]
    %v1463 = vld [vmem:[%s1450 + $0x60] sm:$0xff]
    %v1464 = vld [vmem:[%s1450 + $0x68] sm:$0xff]
    %v1465 = vld [vmem:[%s1450 + $0x70] sm:$0xff]
    %v1466 = vld [vmem:[%s1450 + $0x78] sm:$0xff]
    %v1467 = vld [vmem:[%s1450 + $0x80] sm:$0xff]
    %v1468 = vld [vmem:[%s1450 + $0x88] sm:$0xff]
    %v1469 = vld [vmem:[%s1450 + $0x90] sm:$0xff]
    %v1470 = vld [vmem:[%s1450 + $0x98] sm:$0xff]
    %v1471 = vld [vmem:[%s1450 + $0xa0] sm:$0xff]
    %v1472 = vld [vmem:[%s1450 + $0xa8] sm:$0xff]
    %v1473 = vld [vmem:[%s1450 + $0xb0] sm:$0xff]
    %v1474 = vld [vmem:[%s1450 + $0xb8] sm:$0xff]
    %v1475 = vld [vmem:[%s1450 + $0xc0] sm:$0xff]
    %v1476 = vld [vmem:[%s1450 + $0xc8] sm:$0xff]
    %v1477 = vld [vmem:[%s1450 + $0xd0] sm:$0xff]
    %v1478 = vld [vmem:[%s1450 + $0xd8] sm:$0xff]
    %v1479 = vld [vmem:[%s1450 + $0xe0] sm:$0xff]
    %v1480 = vld [vmem:[%s1450 + $0xe8] sm:$0xff]
    %v1481 = vld [vmem:[%s1450 + $0xf0] sm:$0xff]
    %v1482 = vld [vmem:[%s1450 + $0xf8] sm:$0xff]
    %v1483 = vld [vmem:[%s1450 + $0x100] sm:$0xff]
    %v1484 = vld [vmem:[%s1450 + $0x108] sm:$0xff]
    %v1485 = vld [vmem:[%s1450 + $0x110] sm:$0xff]
    %v1486 = vld [vmem:[%s1450 + $0x118] sm:$0xff]
    %v1487 = vld [vmem:[%s1450 + $0x120] sm:$0xff]
    %v1488 = vld [vmem:[%s1450 + $0x128] sm:$0xff]
    %v1489 = vld [vmem:[%s1450 + $0x130] sm:$0xff]
    %v1490 = vld [vmem:[%s1450 + $0x138] sm:$0xff]
    %v1491 = vld [vmem:[%s1450 + $0x140] sm:$0xff]
    %v1492 = vld [vmem:[%s1450 + $0x148] sm:$0xff]
    %v1493 = vld [vmem:[%s1450 + $0x150] sm:$0xff]
    %v1494 = vld [vmem:[%s1450 + $0x158] sm:$0xff]
    %v1495 = vld [vmem:[%s1450 + $0x160] sm:$0xff]
    %v1496 = vld [vmem:[%s1450 + $0x168] sm:$0xff]
    %v1497 = vld [vmem:[%s1450 + $0x170] sm:$0xff]
    %v1498 = vld [vmem:[%s1450 + $0x178] sm:$0xff]
    %1499 = vmatprep.subr.mxu0 0.0
    %1500 = vmatpush1.msra.mxu0 %v1466
    %1501 = vmatprep.subr.mxu0 0.0
    %1502 = vmatpush1.msra.mxu0 %v1465
    %1503 = vmatprep.subr.mxu0 0.0
    %1504 = vmatpush1.msra.mxu0 %v1464
    %1505 = vmatprep.subr.mxu0 0.0
    %1506 = vmatpush1.msra.mxu0 %v1463
    %1507 = vmatprep.subr.mxu0 0.0
    %1508 = vmatpush1.msra.mxu0 %v1462
    %1509 = vmatprep.subr.mxu0 0.0
    %1510 = vmatpush1.msra.mxu0 %v1461
    %1511 = vmatprep.subr.mxu0 0.0
    %1512 = vmatpush1.msra.mxu0 %v1460
    %1513 = vmatprep.subr.mxu0 0.0
    %1514 = vmatpush1.msra.mxu0 %v1459
    %1515 = vmatprep.subr.mxu0 0.0
    %1516 = vmatpush1.msra.mxu0 %v1458
    %1517 = vmatprep.subr.mxu0 0.0
    %1518 = vmatpush1.msra.mxu0 %v1457
    %1519 = vmatprep.subr.mxu0 0.0
    %1520 = vmatpush1.msra.mxu0 %v1456
    %1521 = vmatprep.subr.mxu0 0.0
    %1522 = vmatpush1.msra.mxu0 %v1455
    %1523 = vmatprep.subr.mxu0 0.0
    %1524 = vmatpush1.msra.mxu0 %v1454
    %1525 = vmatprep.subr.mxu0 0.0
    %1526 = vmatpush1.msra.mxu0 %v1453
    %1527 = vmatprep.subr.mxu0 0.0
    %1528 = vmatpush1.msra.mxu0 %v1452
    %1529 = vmatprep.subr.mxu0 0.0
    %1530 = vmatpush1.msra.mxu0 %v1451
    %1531 = vmatprep.subr.mxu0 0.0
    %1532 = vmatpush2.msra.mxu0 %v1482
    %1533 = vmatprep.subr.mxu0 0.0
    %1534 = vmatpush2.msra.mxu0 %v1481
    %1535 = vmatprep.subr.mxu0 0.0
    %1536 = vmatpush2.msra.mxu0 %v1480
    %1537 = vmatprep.subr.mxu0 0.0
    %1538 = vmatpush2.msra.mxu0 %v1479
    %1539 = vmatprep.subr.mxu0 0.0
    %1540 = vmatpush2.msra.mxu0 %v1478
    %1541 = vmatprep.subr.mxu0 0.0
    %1542 = vmatpush2.msra.mxu0 %v1477
    %1543 = vmatprep.subr.mxu0 0.0
    %1544 = vmatpush2.msra.mxu0 %v1476
    %1545 = vmatprep.subr.mxu0 0.0
    %1546 = vmatpush2.msra.mxu0 %v1475
    %1547 = vmatprep.subr.mxu0 0.0
    %1548 = vmatpush2.msra.mxu0 %v1474
    %1549 = vmatprep.subr.mxu0 0.0
    %1550 = vmatpush2.msra.mxu0 %v1473
    %1551 = vmatprep.subr.mxu0 0.0
    %1552 = vmatpush2.msra.mxu0 %v1472
    %1553 = vmatprep.subr.mxu0 0.0
    %1554 = vmatpush2.msra.mxu0 %v1471
    %1555 = vmatprep.subr.mxu0 0.0
    %1556 = vmatpush2.msra.mxu0 %v1470
    %1557 = vmatprep.subr.mxu0 0.0
    %1558 = vmatpush2.msra.mxu0 %v1469
    %1559 = vmatprep.subr.mxu0 0.0
    %1560 = vmatpush2.msra.mxu0 %v1468
    %1561 = vmatprep.subr.mxu0 0.0
    %1562 = vmatpush2.msra.mxu0 %v1467
    %1563 = vmatprep.mubr.f32.mxu0 %v1410
    %1564 = vmatmul.mubr.f32.gmra.mxu0 %v1422
    %v1565 = vpop.f32.mrf.mxu0
    %v1566 = vadd.f32 0.0, %v1565
    %v1567 = vpop.f32.mrf.mxu0
    %1568 = vmatprep.mubr.f32.mxu0 %v1411
    %1569 = vmatmul.mubr.f32.gmra.mxu0 %v1423
    %v1570 = vpop.f32.mrf.mxu0
    %v1571 = vadd.f32 0.0, %v1570
    %v1572 = vpop.f32.mrf.mxu0
    %1573 = vmatprep.mubr.f32.mxu0 %v1412
    %1574 = vmatmul.mubr.f32.gmra.mxu0 %v1424
    %v1575 = vpop.f32.mrf.mxu0
    %v1576 = vadd.f32 0.0, %v1575
    %v1577 = vpop.f32.mrf.mxu0
    %1578 = vmatprep.mubr.f32.mxu0 %v1413
    %1579 = vmatmul.mubr.f32.gmra.mxu0 %v1425
    %v1580 = vpop.f32.mrf.mxu0
    %v1581 = vadd.f32 0.0, %v1580
    %v1582 = vpop.f32.mrf.mxu0
    %1583 = vdwg.mxu0
    %1584 = vmatprep.subr.mxu0 0.0
    %1585 = vmatpush1.msra.mxu0 %v1498
    %1586 = vmatprep.subr.mxu0 0.0
    %1587 = vmatpush1.msra.mxu0 %v1497
    %1588 = vmatprep.subr.mxu0 0.0
    %1589 = vmatpush1.msra.mxu0 %v1496
    %1590 = vmatprep.subr.mxu0 0.0
    %1591 = vmatpush1.msra.mxu0 %v1495
    %1592 = vmatprep.subr.mxu0 0.0
    %1593 = vmatpush1.msra.mxu0 %v1494
    %1594 = vmatprep.subr.mxu0 0.0
    %1595 = vmatpush1.msra.mxu0 %v1493
    %1596 = vmatprep.subr.mxu0 0.0
    %1597 = vmatpush1.msra.mxu0 %v1492
    %1598 = vmatprep.subr.mxu0 0.0
    %1599 = vmatpush1.msra.mxu0 %v1491
    %1600 = vmatprep.subr.mxu0 0.0
    %1601 = vmatpush1.msra.mxu0 %v1490
    %1602 = vmatprep.subr.mxu0 0.0
    %1603 = vmatpush1.msra.mxu0 %v1489
    %1604 = vmatprep.subr.mxu0 0.0
    %1605 = vmatpush1.msra.mxu0 %v1488
    %1606 = vmatprep.subr.mxu0 0.0
    %1607 = vmatpush1.msra.mxu0 %v1487
    %1608 = vmatprep.subr.mxu0 0.0
    %1609 = vmatpush1.msra.mxu0 %v1486
    %1610 = vmatprep.subr.mxu0 0.0
    %1611 = vmatpush1.msra.mxu0 %v1485
    %1612 = vmatprep.subr.mxu0 0.0
    %1613 = vmatpush1.msra.mxu0 %v1484
    %1614 = vmatprep.subr.mxu0 0.0
    %1615 = vmatpush1.msra.mxu0 %v1483
    %1616 = vmatprep.subr.mxu0 0.0
    %1617 = vmatpush2.msra.mxu0 0.0
    %1618 = vmatprep.subr.mxu0 0.0
    %1619 = vmatpush2.msra.mxu0 0.0
    %1620 = vmatprep.subr.mxu0 0.0
    %1621 = vmatpush2.msra.mxu0 0.0
    %1622 = vmatprep.subr.mxu0 0.0
    %1623 = vmatpush2.msra.mxu0 0.0
    %1624 = vmatprep.subr.mxu0 0.0
    %1625 = vmatpush2.msra.mxu0 0.0
    %1626 = vmatprep.subr.mxu0 0.0
    %1627 = vmatpush2.msra.mxu0 0.0
    %1628 = vmatprep.subr.mxu0 0.0
    %1629 = vmatpush2.msra.mxu0 0.0
    %1630 = vmatprep.subr.mxu0 0.0
    %1631 = vmatpush2.msra.mxu0 0.0
    %1632 = vmatprep.subr.mxu0 0.0
    %1633 = vmatpush2.msra.mxu0 0.0
    %1634 = vmatprep.subr.mxu0 0.0
    %1635 = vmatpush2.msra.mxu0 0.0
    %1636 = vmatprep.subr.mxu0 0.0
    %1637 = vmatpush2.msra.mxu0 0.0
    %1638 = vmatprep.subr.mxu0 0.0
    %1639 = vmatpush2.msra.mxu0 0.0
    %1640 = vmatprep.subr.mxu0 0.0
    %1641 = vmatpush2.msra.mxu0 0.0
    %1642 = vmatprep.subr.mxu0 0.0
    %1643 = vmatpush2.msra.mxu0 0.0
    %1644 = vmatprep.subr.mxu0 0.0
    %1645 = vmatpush2.msra.mxu0 0.0
    %1646 = vmatprep.subr.mxu0 0.0
    %1647 = vmatpush2.msra.mxu0 0.0
    %1648 = vmatprep.mubr.f32.mxu0 0.0
    %1649 = vmatmul.mubr.f32.gmra.mxu0 %v1434
    %v1650 = vpop.f32.mrf.mxu0
    %v1651 = vadd.f32 %v1566, %v1650
    %v1652 = vpop.f32.mrf.mxu0
    %1653 = vmatprep.mubr.f32.mxu0 0.0
    %1654 = vmatmul.mubr.f32.gmra.mxu0 %v1435
    %v1655 = vpop.f32.mrf.mxu0
    %v1656 = vadd.f32 %v1571, %v1655
    %v1657 = vpop.f32.mrf.mxu0
    %1658 = vmatprep.mubr.f32.mxu0 0.0
    %1659 = vmatmul.mubr.f32.gmra.mxu0 %v1436
    %v1660 = vpop.f32.mrf.mxu0
    %v1661 = vadd.f32 %v1576, %v1660
    %v1662 = vpop.f32.mrf.mxu0
    %1663 = vmatprep.mubr.f32.mxu0 0.0
    %1664 = vmatmul.mubr.f32.gmra.mxu0 %v1437
    %v1665 = vpop.f32.mrf.mxu0
    %v1666 = vadd.f32 %v1581, %v1665
    %v1667 = vpop.f32.mrf.mxu0
    %1668 = vdwg.mxu0
    %v1669 = vadd.f32 %v1446, %v1651
    %v1670 = vadd.f32 %v1447, %v1656
    %v1671 = vadd.f32 %v1448, %v1661
    %v1672 = vadd.f32 %v1449, %v1666
    %v1673 = vadd.f32 %v1669, %v1670
    %v1674 = vadd.f32 %v1673, %v1671
    %v1675 = vadd.f32 %v1674, %v1672
    %v1676 = vrot.slane %v1675, 4
    %v1677 = vadd.f32 %v1675, %v1676
    %v1678 = vrot.slane %v1677, 2
    %v1679 = vadd.f32 %v1677, %v1678
    %v1680 = vrot.slane %v1679, 1
    %v1681 = vadd.f32 %v1679, %v1680
    %v1682 = vmul.f32 %v1669, %v1669
    %v1683 = vmul.f32 %v1670, %v1670
    %v1684 = vmul.f32 %v1671, %v1671
    %v1685 = vmul.f32 %v1672, %v1672
    %v1686 = vadd.f32 %v1682, %v1683
    %v1687 = vadd.f32 %v1686, %v1684
    %v1688 = vadd.f32 %v1687, %v1685
    %v1689 = vrot.slane %v1688, 4
    %v1690 = vadd.f32 %v1688, %v1689
    %v1691 = vrot.slane %v1690, 2
    %v1692 = vadd.f32 %v1690, %v1691
    %v1693 = vrot.slane %v1692, 1
    %v1694 = vadd.f32 %v1692, %v1693
    %1695 = vmatprep.subr.mxu0 %v482
    %1696 = vmatpush1.msra.mxu0 %v481
    %1697 = vmatprep.subr.mxu0 %v480
    %1698 = vmatpush1.msra.mxu0 %v479
    %1699 = vmatprep.subr.mxu0 %v478
    %1700 = vmatpush1.msra.mxu0 %v477
    %1701 = vmatprep.subr.mxu0 %v476
    %1702 = vmatpush1.msra.mxu0 %v475
    %1703 = vmatprep.subr.mxu0 %v474
    %1704 = vmatpush1.msra.mxu0 %v473
    %1705 = vmatprep.subr.mxu0 %v472
    %1706 = vmatpush1.msra.mxu0 %v471
    %1707 = vmatprep.subr.mxu0 %v470
    %1708 = vmatpush1.msra.mxu0 %v469
    %1709 = vmatprep.subr.mxu0 %v468
    %1710 = vmatpush1.msra.mxu0 %v467
    %1711 = vmatprep.subr.mxu0 %v466
    %1712 = vmatpush1.msra.mxu0 %v465
    %1713 = vmatprep.subr.mxu0 %v464
    %1714 = vmatpush1.msra.mxu0 %v463
    %1715 = vmatprep.subr.mxu0 %v462
    %1716 = vmatpush1.msra.mxu0 %v461
    %1717 = vmatprep.subr.mxu0 %v460
    %1718 = vmatpush1.msra.mxu0 %v459
    %1719 = vmatprep.subr.mxu0 %v458
    %1720 = vmatpush1.msra.mxu0 %v457
    %1721 = vmatprep.subr.mxu0 %v456
    %1722 = vmatpush1.msra.mxu0 %v455
    %1723 = vmatprep.subr.mxu0 %v454
    %1724 = vmatpush1.msra.mxu0 %v453
    %1725 = vmatprep.subr.mxu0 %v452
    %1726 = vmatpush1.msra.mxu0 %v451
    %1727 = vmatprep.subr.mxu0 %v514
    %1728 = vmatpush2.msra.mxu0 %v513
    %1729 = vmatprep.subr.mxu0 %v512
    %1730 = vmatpush2.msra.mxu0 %v511
    %1731 = vmatprep.subr.mxu0 %v510
    %1732 = vmatpush2.msra.mxu0 %v509
    %1733 = vmatprep.subr.mxu0 %v508
    %1734 = vmatpush2.msra.mxu0 %v507
    %1735 = vmatprep.subr.mxu0 %v506
    %1736 = vmatpush2.msra.mxu0 %v505
    %1737 = vmatprep.subr.mxu0 %v504
    %1738 = vmatpush2.msra.mxu0 %v503
    %1739 = vmatprep.subr.mxu0 %v502
    %1740 = vmatpush2.msra.mxu0 %v501
    %1741 = vmatprep.subr.mxu0 %v500
    %1742 = vmatpush2.msra.mxu0 %v499
    %1743 = vmatprep.subr.mxu0 %v498
    %1744 = vmatpush2.msra.mxu0 %v497
    %1745 = vmatprep.subr.mxu0 %v496
    %1746 = vmatpush2.msra.mxu0 %v495
    %1747 = vmatprep.subr.mxu0 %v494
    %1748 = vmatpush2.msra.mxu0 %v493
    %1749 = vmatprep.subr.mxu0 %v492
    %1750 = vmatpush2.msra.mxu0 %v491
    %1751 = vmatprep.subr.mxu0 %v490
    %1752 = vmatpush2.msra.mxu0 %v489
    %1753 = vmatprep.subr.mxu0 %v488
    %1754 = vmatpush2.msra.mxu0 %v487
    %1755 = vmatprep.subr.mxu0 %v486
    %1756 = vmatpush2.msra.mxu0 %v485
    %1757 = vmatprep.subr.mxu0 %v484
    %1758 = vmatpush2.msra.mxu0 %v483
    %1759 = vmatprep.mubr.f32.mxu0 %v1694
    %1760 = vmatmul.mubr.f32.gmra.mxu0 %v1681
    %v1761 = vpop.f32.mrf.mxu0
    %v1762 = vadd.f32 0.0, %v1761
    %v1763 = vpop.f32.mrf.mxu0
    %v1764 = vadd.f32 0.0, %v1763
    %1765 = vdwg.mxu0
    %v1766 = vmul.f32 %v1762, 0.001953125
    %v1767 = vmul.f32 %v1764, 0.001953125
    %v1768 = vmul.f32 %v1766, %v1766
    %v1769 = vsub.f32 %v1767, %v1768
    %v1770 = vmax.f32 %v1769, 0.0
    %v1771 = vadd.f32 %v1770, 1e-05
    %v1772 = vrsqrt.pop %v1771
    %s1773 = scalar_lea.vmem %s3, 3
    %v1774 = vld [vmem:[%s1773] sm:$0x1]
    %v1775 = vmul.f32 %v1774, %v1772
    %s1776 = scalar_lea.vmem [#allocation8], 3
    %v1777 = vld [vmem:[%s1776] sm:$0x1]
    %v1778 = vmul.f32 %v1766, %v1775
    %v1779 = vsub.f32 %v1777, %v1778
    %v1781 = vlaneseq
    %v1782 = vshrl.u32 %v1781, 7
    %v1783 = vsub.s32 0, %v1782
    %v1784 = vrot.slane %v1775, %v1783
    %v1786 = vmul.f32 %v1669, %v1784
    %v1787 = vmul.f32 %v1670, %v1784
    %v1788 = vmul.f32 %v1671, %v1784
    %v1789 = vmul.f32 %v1672, %v1784
    %v1791 = vlaneseq
    %v1792 = vshrl.u32 %v1791, 7
    %v1793 = vsub.s32 0, %v1792
    %v1794 = vrot.slane %v1779, %v1793
    %v1796 = vadd.f32 %v1786, %v1794
    %v1797 = vadd.f32 %v1787, %v1794
    %v1798 = vadd.f32 %v1788, %v1794
    %v1799 = vadd.f32 %v1789, %v1794
    %v1800 = vmax.f32 %v1796, 0.0
    %v1801 = vmax.f32 %v1797, 0.0
    %v1802 = vmax.f32 %v1798, 0.0
    %v1803 = vmax.f32 %v1799, 0.0
    %1804 = vst [vmem:[#allocation11] sm:$0xff] %v1800
    %1805 = vst [vmem:[#allocation11 + $0x8] sm:$0xff] %v1801
    %1806 = vst [vmem:[#allocation11 + $0x10] sm:$0xff] %v1802
    %1807 = vst [vmem:[#allocation11 + $0x18] sm:$0xff] %v1803
    // Predicated region
    $region46: #{tpu_custom_call.1} parent=1 // pred_check
      _
    $region47: #{tpu_custom_call.1} parent=1 // pred_check_branch
      %1809 = sbr.rel (0) target = $region49
    $region48: #{tpu_custom_call.1} parent=1 // pred_region
      %s1811 = ssub.s32 512, 512
      %1812 = vsyncadd [#allocation4], %s1811
      %s1813 = sshll.u32 [#allocation11], 4
      %s1814 = int_to_ptr.vmem [resolvable:$true] %s1813
      %1819 = dma.vmem_to_hbm [thread:$0]  %s1814, 512, %s6, [#allocation4], 128, 128, 8
    $region49: #{tpu_custom_call.1} parent=1 // pred_fallthru
      _
    // Predicated region
    $region50: #{tpu_custom_call.1} parent=1 // pred_check
      _
    $region51: #{tpu_custom_call.1} parent=1 // pred_check_branch
      %1821 = sbr.rel (0) target = $region53
    $region52: #{tpu_custom_call.1} parent=1 // pred_region
      %1822 = dma.done [#allocation4], 512
    $region53: #{tpu_custom_call.1} parent=1 // pred_fallthru
      _
    %1823 = vsyncpa [#allocation3], 1
    %1824 = vsyncpa [#allocation6], 1
    %1825 = vsyncpa [#allocation9], 1
    %1826 = vsyncpa [#allocation4], 1

</llo_original>
